<compile_context>
chip_gen: v7x
topology: tpu7x:2x2x1
jax: 0.10.0
libtpu: 0.0.40
codegen_flags: <defaults>
</compile_context>

<pallas_src>
import jax
import jax.numpy as jnp
from jax import lax
from jax.experimental import pallas as pl
from jax.experimental.pallas import tpu as pltpu


def _round_up(x, m):
    return ((x + m - 1) // m) * m


# ----------------------------------------------------------------------------
# Pallas kernel: mean-field iterations for one (row-tile, batch) grid step.
# ----------------------------------------------------------------------------
def _make_mean_field_kernel(W, C, Gp, Lr, Lout, PAD, PADL, halo,
                            num_iterations, final_logits):
    def kernel(valid_ref, u_ref, g_ref, wq_ref, wg_ref, out_ref,
               zq_ref, zg_ref):
        u = u_ref[...]                       # (C,  Lr) f32  (unary, with halo)
        wq = wq_ref[...]                     # (3, C, 3*C)  bf16, per-dy blocks
        wg = wg_ref[...]                     # (3, C, 3*Gp) bf16

        # --- hoisted masks (JAX does not CSE broadcast_in_dim) --------------
        col = lax.broadcasted_iota(jnp.int32, (1, Lr), 1) % W
        not_first = (col > 0).astype(jnp.float32)        # x > 0
        not_last = (col < (W - 1)).astype(jnp.float32)   # x < W-1
        mf_q = jnp.broadcast_to(not_first, (C, Lr))
        ml_q = jnp.broadcast_to(not_last, (C, Lr))
        mf_g = jnp.broadcast_to(not_first, (Gp, Lr))
        ml_g = jnp.broadcast_to(not_last, (Gp, Lr))
        # Row-validity (zero out halo rows that lie outside the real image,
        # matching the conv's zero padding), broadcast once.
        vq = jnp.broadcast_to(valid_ref[...], (C, Lr))

        # --- zero the lane pad strips of the shift scratches -----------------
        # (kept per grid step: scratch state is per-core under megacore, so a
        #  program_id == 0 gate would be unsafe; cost is a few KiB of stores)
        zq_ref[:, :PAD] = jnp.zeros((C, PAD), jnp.float32)
        zq_ref[:, PAD + Lr:] = jnp.zeros((C, PAD), jnp.float32)
        zg_ref[:, :PAD] = jnp.zeros((Gp, PAD), jnp.float32)
        zg_ref[:, PAD + Lr:] = jnp.zeros((Gp, PAD), jnp.float32)

        def conv_msg(z_ref, w3, m_first, m_last, acc):
            # 3x3 conv over the flattened (rows on lanes) tile, accumulated as
            # 3 per-dy matmuls of K = 3*rows — no 9x im2col slab is ever built.
            for ky, dy in enumerate((-1, 0, 1)):
                base = PAD + dy * W
                c = z_ref[:, base:base + Lr]                       # dx = 0
                lft = z_ref[:, base - 1:base - 1 + Lr] * m_first   # dx = -1
                rgt = z_ref[:, base + 1:base + 1 + Lr] * m_last    # dx = +1
                slab = jnp.concatenate([lft, c, rgt],
                                       axis=0).astype(jnp.bfloat16)
                acc = acc + jnp.dot(w3[ky], slab,
                                    preferred_element_type=jnp.float32)
            return acc

        def softmax_ch(x):
            m = jnp.max(x, axis=0, keepdims=True)
            e = jnp.exp(x - m)
            return e / jnp.sum(e, axis=0, keepdims=True)

        # Guidance message is iteration-invariant: compute it once per tile.
        zg_ref[:, PAD:PAD + Lr] = g_ref[...].astype(jnp.float32)
        msg_g = conv_msg(zg_ref, wg, mf_g, ml_g,
                         jnp.zeros((C, Lr), jnp.float32))

        Q = softmax_ch(u)
        for it in range(num_iterations):
            zq_ref[:, PAD:PAD + Lr] = Q * vq
            msg = conv_msg(zq_ref, wq, mf_q, ml_q, msg_g)
            updated = u - msg
            if it == num_iterations - 1 and final_logits:
                Q = updated
            else:
                Q = softmax_ch(updated)

        # Only the interior rows of the halo'd tile are exact & written out.
        out_ref[...] = Q[:, halo * W: halo * W + Lout]

    return kernel


def mean_field_update_pallas(logits_nchw, guidance_nchw, wq3, wg3,
                             num_iterations, final_logits,
                             max_tile_lanes=32768):
    """Iterated mean-field update.  NCHW in, NCHW out (guidance pre-padded).

    max_tile_lanes bounds TH*W per grid step (lower it on v7x / raise on v5e).
    """
    N, C, H, W = logits_nchw.shape
    Gp = guidance_nchw.shape[1]

    halo = num_iterations                       # exact halo for the 3x3 conv
    TH = max(1, min(H, max_tile_lanes // max(W, 1)))
    num_tiles = (H + TH - 1) // TH
    H_round = num_tiles * TH
    R = TH + 2 * halo                           # loaded rows per tile
    Lr = R * W                                  # loaded lanes per tile
    Lout = TH * W                               # output lanes per tile
    PAD = _round_up(W + 1, 128)                 # lane pad (>= W+1, aligned)
    PADL = PAD + Lr + PAD

    def build_tiles(x, dtype):
        # (N, C', H, W) -> halo'd row tiles (N, num_tiles, C', R*W).
        xp = jnp.pad(x.astype(jnp.float32),
                     ((0, 0), (0, 0), (halo, halo + H_round - H), (0, 0)))
        row_idx = (jnp.arange(num_tiles)[:, None] * TH
                   + jnp.arange(R)[None, :])                 # (num_tiles, R)
        t = xp[:, :, row_idx, :]                  # (N, C', num_tiles, R, W)
        t = jnp.transpose(t, (0, 2, 1, 3, 4))     # (N, num_tiles, C', R, W)
        return t.reshape(N, num_tiles, x.shape[1], Lr).astype(dtype)

    unary_t = build_tiles(logits_nchw, jnp.float32)
    guid_t = build_tiles(guidance_nchw, jnp.bfloat16)

    # Per-tile row-validity mask (1 inside the original image, 0 in pad rows).
    g_rows = (jnp.arange(num_tiles)[:, None] * TH - halo
              + jnp.arange(R)[None, :])                      # (num_tiles, R)
    valid = ((g_rows >= 0) & (g_rows < H)).astype(jnp.float32)
    valid_t = jnp.broadcast_to(valid[:, :, None],
                               (num_tiles, R, W)).reshape(num_tiles, 1, Lr)

    kernel = _make_mean_field_kernel(W, C, Gp, Lr, Lout, PAD, PADL, halo,
                                     num_iterations, final_logits)

    out = pl.pallas_call(
        kernel,
        out_shape=jax.ShapeDtypeStruct((N, num_tiles, C, Lout), jnp.float32),
        grid_spec=pltpu.PrefetchScalarGridSpec(
            num_scalar_prefetch=0,
            grid=(num_tiles, N),                 # tile axis leading (v7x 2-TC)
            in_specs=[
                pl.BlockSpec((None, 1, Lr), lambda t, b: (t, 0, 0)),
                pl.BlockSpec((None, None, C, Lr), lambda t, b: (b, t, 0, 0)),
                pl.BlockSpec((None, None, Gp, Lr), lambda t, b: (b, t, 0, 0)),
                pl.BlockSpec((3, C, 3 * C), lambda t, b: (0, 0, 0)),
                pl.BlockSpec((3, C, 3 * Gp), lambda t, b: (0, 0, 0)),
            ],
            out_specs=pl.BlockSpec((None, None, C, Lout),
                                   lambda t, b: (b, t, 0, 0)),
            scratch_shapes=[
                pltpu.VMEM((C, PADL), jnp.float32),   # padded Q scratch
                pltpu.VMEM((Gp, PADL), jnp.float32),  # padded guidance scratch
            ],
        ),
        compiler_params=pltpu.CompilerParams(
            dimension_semantics=("parallel", "parallel"),
            vmem_limit_bytes=48 * 1024 * 1024),
    )(valid_t, unary_t, guid_t, wq3, wg3)

    q = out.reshape(N, num_tiles, C, TH, W)
    q = jnp.transpose(q, (0, 2, 1, 3, 4)).reshape(N, C, H_round, W)
    return q[:, :, :H, :]


# ----------------------------------------------------------------------------
# Wrapper-side weight fusion (spatial depthwise + bilateral + 1x1 compat),
# laid out per dy as (3, C_out, 3*C_in) bf16 blocks for the per-dy matmuls.
# ----------------------------------------------------------------------------
def fused_kernel_weights(params, num_guidance=6):
    C = params['w_spatial'].shape[0]
    G = num_guidance
    Gp = _round_up(G, 8)
    w_sp = params['w_spatial'][:, 0]            # (C, 3, 3)
    w_bl = params['w_bilateral']                # (C, C+G, 3, 3)
    w_cp = params['w_compat'][:, :, 0, 0]       # (C_out, C_in)

    # Embed the depthwise spatial weights on the Q-channel diagonal.
    eye_cg = jnp.concatenate(
        [jnp.eye(C, dtype=w_bl.dtype), jnp.zeros((C, G), w_bl.dtype)], axis=1)
    w_plus = w_bl + w_sp[:, None, :, :] * eye_cg[:, :, None, None]

    # Fold the 1x1 compatibility conv (exact by linearity).
    wf = jnp.einsum('oc,cikl->oikl', w_cp, w_plus,
                    precision=lax.Precision.HIGHEST)        # (C, C+G, 3, 3)

    wq_f = wf[:, :C]                                         # (C, C, 3, 3)
    wg_f = wf[:, C:]                                         # (C, G, 3, 3)
    if Gp > G:
        wg_f = jnp.concatenate(
            [wg_f, jnp.zeros((C, Gp - G, 3, 3), wf.dtype)], axis=1)

    # (o, i, ky, kx) -> (ky, o, kx, i) -> (3, C, 3*C_in): slab row order is
    # [dx=-1 channels, dx=0 channels, dx=+1 channels].
    wq3 = jnp.transpose(wq_f, (2, 0, 3, 1)).reshape(3, C, 3 * C)
    wg3 = jnp.transpose(wg_f, (2, 0, 3, 1)).reshape(3, C, 3 * Gp)
    return wq3.astype(jnp.bfloat16), wg3.astype(jnp.bfloat16), Gp


# ----------------------------------------------------------------------------
# Plain-JAX glue: bilinear (align_corners=True) resize, skip fusion, params.
# ----------------------------------------------------------------------------
def bilinear_resize_ac(x, out_hw):
    """F.interpolate(..., mode='bilinear', align_corners=True) for NCHW."""
    N, C, H, W = x.shape
    Ho, Wo = out_hw

    def src_coords(n_out, n_in):
        if n_out == 1:
            return jnp.zeros((1,), jnp.float32)
        return jnp.arange(n_out, dtype=jnp.float32) * (
            float(n_in - 1) / float(n_out - 1))

    ys = src_coords(Ho, H)
    xs = src_coords(Wo, W)
    y0 = jnp.clip(jnp.floor(ys).astype(jnp.int32), 0, H - 1)
    y1 = jnp.minimum(y0 + 1, H - 1)
    wy = (ys - y0.astype(jnp.float32))[None, None, :, None]
    x0 = jnp.clip(jnp.floor(xs).astype(jnp.int32), 0, W - 1)
    x1 = jnp.minimum(x0 + 1, W - 1)
    wx = (xs - x0.astype(jnp.float32))[None, None, None, :]

    top = x[:, :, y0, :]
    bot = x[:, :, y1, :]
    v = top * (1.0 - wy) + bot * wy
    left = v[:, :, :, x0]
    right = v[:, :, :, x1]
    return left * (1.0 - wx) + right * wx


def fuse_skip_features(skip_features, skip_proj_params, target_size):
    proj_feats = []
    for feat, (w, b) in zip(skip_features, skip_proj_params):
        p = jnp.einsum('nchw,oc->nohw', feat, w[:, :, 0, 0]) \
            + b[None, :, None, None]
        p = bilinear_resize_ac(p, target_size)
        proj_feats.append(p)
    return jnp.mean(jnp.stack(proj_feats, axis=0), axis=0)


def init_params(key, num_classes, skip_channels):
    C = num_classes
    keys = jax.random.split(key, 2 + 2 * len(skip_channels))
    w_spatial = jax.random.normal(keys[0], (C, 1, 3, 3), jnp.float32) * 0.1
    w_bilateral = jax.random.normal(keys[1], (C, C + 6, 3, 3), jnp.float32) * 0.1
    # compat_conv initialized to exactly -I (as in the PyTorch __init__).
    w_compat = -jnp.eye(C, dtype=jnp.float32).reshape(C, C, 1, 1)
    skip_proj = []
    for i, ch in enumerate(skip_channels):
        kw = keys[2 + 2 * i]
        kb = keys[3 + 2 * i]
        w = jax.random.normal(kw, (3, ch, 1, 1), jnp.float32) * 0.1
        b = jax.random.normal(kb, (3,), jnp.float32) * 0.01
        skip_proj.append((w, b))
    return {
        'w_spatial': w_spatial,       # (C, 1, 3, 3), depthwise, no bias
        'w_bilateral': w_bilateral,   # (C, C+6, 3, 3), no bias
        'w_compat': w_compat,         # (C, C, 1, 1), no bias
        'skip_proj': skip_proj,       # list of ((3, ch, 1, 1), (3,))
    }


# ----------------------------------------------------------------------------
# Full forward pass (mirrors HierarchicalDenseCRF.forward)
# ----------------------------------------------------------------------------
def hierarchical_dense_crf_forward(params, logits, image, skip_features=None,
                                   return_logits=False, num_iterations=2,
                                   max_tile_lanes=32768):
    N, C, H, W = logits.shape
    target = (H, W)

    if skip_features is not None:
        fused_skip = fuse_skip_features(skip_features, params['skip_proj'],
                                        target)
    else:
        fused_skip = jnp.zeros((N, 3, H, W), logits.dtype)

    guidance = jnp.concatenate([image, fused_skip], axis=1)   # (N, 6, H, W)
    G = guidance.shape[1]

    wq3, wg3, Gp = fused_kernel_weights(params, num_guidance=G)
    if Gp > G:  # zero-pad guidance channels (matched by zero weight columns)
        guidance = jnp.concatenate(
            [guidance, jnp.zeros((N, Gp - G, H, W), guidance.dtype)], axis=1)

    # Full-resolution mean-field refinement (Pallas kernel).
    Q_full = mean_field_update_pallas(logits, guidance, wq3, wg3,
                                      num_iterations, return_logits,
                                      max_tile_lanes)

    # Half-resolution branch (scale_factor=0.5, bilinear, align_corners=True).
    Hd, Wd = int(H * 0.5), int(W * 0.5)
    logits_down = bilinear_resize_ac(logits, (Hd, Wd))
    guidance_down = bilinear_resize_ac(guidance, (Hd, Wd))
    Q_down = mean_field_update_pallas(logits_down, guidance_down, wq3, wg3,
                                      num_iterations, return_logits,
                                      max_tile_lanes)
    Q_down_up = bilinear_resize_ac(Q_down, target)

    return (Q_full + Q_down_up) / 2.0


# ----------------------------------------------------------------------------
# Plain-JAX (XLA) reference of the original PyTorch forward, for verification.
# ----------------------------------------------------------------------------
def _depthwise_conv3x3_ref(x, w):
    N, C, H, W = x.shape
    xp = jnp.pad(x, ((0, 0), (0, 0), (1, 1), (1, 1)))
    out = jnp.zeros_like(x)
    for ky in range(3):
        for kx in range(3):
            out = out + xp[:, :, ky:ky + H, kx:kx + W] * \
                w[:, 0, ky, kx][None, :, None, None]
    return out


def _conv3x3_ref(x, w):
    N, Ci, H, W = x.shape
    xp = jnp.pad(x, ((0, 0), (0, 0), (1, 1), (1, 1)))
    out = jnp.zeros((N, w.shape[0], H, W), x.dtype)
    for ky in range(3):
        for kx in range(3):
            out = out + jnp.einsum('nihw,oi->nohw',
                                   xp[:, :, ky:ky + H, kx:kx + W],
                                   w[:, :, ky, kx],
                                   precision=lax.Precision.HIGHEST)
    return out


def mean_field_update_reference(params, unary, guidance, num_iterations,
                                final_logits):
    w_cp = params['w_compat'][:, :, 0, 0]
    Q = jax.nn.softmax(unary, axis=1)
    for i in range(num_iterations):
        spatial_msg = _depthwise_conv3x3_ref(Q, params['w_spatial'])
        bilateral_msg = _conv3x3_ref(jnp.concatenate([Q, guidance], axis=1),
                                     params['w_bilateral'])
        message = jnp.einsum('nchw,oc->nohw', spatial_msg + bilateral_msg, w_cp,
                             precision=lax.Precision.HIGHEST)
        updated = unary - message
        if i == num_iterations - 1 and final_logits:
            Q = updated
        else:
            Q = jax.nn.softmax(updated, axis=1)
    return Q


def hierarchical_dense_crf_reference(params, logits, image, skip_features=None,
                                     return_logits=False, num_iterations=2):
    N, C, H, W = logits.shape
    target = (H, W)
    if skip_features is not None:
        fused_skip = fuse_skip_features(skip_features, params['skip_proj'],
                                        target)
    else:
        fused_skip = jnp.zeros((N, 3, H, W), logits.dtype)
    guidance = jnp.concatenate([image, fused_skip], axis=1)
    Q_full = mean_field_update_reference(params, logits, guidance,
                                         num_iterations, return_logits)
    Hd, Wd = int(H * 0.5), int(W * 0.5)
    logits_down = bilinear_resize_ac(logits, (Hd, Wd))
    guidance_down = bilinear_resize_ac(guidance, (Hd, Wd))
    Q_down = mean_field_update_reference(params, logits_down, guidance_down,
                                         num_iterations, return_logits)
    Q_down_up = bilinear_resize_ac(Q_down, target)
    return (Q_full + Q_down_up) / 2.0


# ----------------------------------------------------------------------------
if __name__ == "__main__":
    num_classes = 8
    N, H, W = 2, 16, 16
    skip_channels = (8, 16, 32)
    skip_sizes = [(16, 16), (8, 8), (4, 4)]

    key = jax.random.PRNGKey(0)
    keys = jax.random.split(key, 3 + len(skip_channels))
    params = init_params(keys[0], num_classes, skip_channels)
    logits = jax.random.normal(keys[1], (N, num_classes, H, W), jnp.float32)
    image = jax.random.normal(keys[2], (N, 3, H, W), jnp.float32)
    skip_features = [
        jax.random.normal(k, (N, ch, hs, ws), jnp.float32)
        for k, ch, (hs, ws) in zip(keys[3:], skip_channels, skip_sizes)
    ]

    ref = hierarchical_dense_crf_reference(
        params, logits, image, skip_features=skip_features, return_logits=False)
    ref = jax.block_until_ready(ref)

    # 1) Default tiling (single row tile at this size).
    out = hierarchical_dense_crf_forward(
        params, logits, image, skip_features=skip_features, return_logits=False)
    out = jax.block_until_ready(out)
    assert out.shape == (N, num_classes, H, W), out.shape
    assert bool(jnp.all(jnp.isfinite(out)))
    max_diff = float(jnp.max(jnp.abs(out - ref)))
    assert max_diff < 2e-2, f"kernel vs reference max |diff| = {max_diff}"

    # 2) Forced multi-tile path (exercises the inter-tile halo logic).
    out_t = hierarchical_dense_crf_forward(
        params, logits, image, skip_features=skip_features,
        return_logits=False, max_tile_lanes=128)
    out_t = jax.block_until_ready(out_t)
    max_diff_t = float(jnp.max(jnp.abs(out_t - ref)))
    assert max_diff_t < 2e-2, f"tiled kernel vs reference max |diff| = {max_diff_t}"

    print("KERNEL_OK")
</pallas_src>

<mosaic_0001>
module attributes {stable_mosaic.version = 11 : i64} {
  func.func @kernel(%arg0: i32, %arg1: i32, %arg2: memref<1x1x320xf32, #tpu.memory_space<vmem>>, %arg3: memref<1x1x8x320xf32, #tpu.memory_space<vmem>>, %arg4: memref<1x1x8x320xbf16, #tpu.memory_space<vmem>>, %arg5: memref<3x8x24xbf16, #tpu.memory_space<vmem>>, %arg6: memref<3x8x24xbf16, #tpu.memory_space<vmem>>, %arg7: memref<1x1x8x256xf32, #tpu.memory_space<vmem>>, %arg8: memref<8x576xf32, #tpu.memory_space<vmem>>, %arg9: memref<8x576xf32, #tpu.memory_space<vmem>>) attributes {dimension_semantics = [#tpu.dimension_semantics<parallel>, #tpu.dimension_semantics<parallel>], iteration_bounds = array<i64: 1, 2>, scalar_prefetch = 0 : i64, scratch_operands = 2 : i64, tpu.core_type = #tpu.core_type<tc>, window_params = [{transform_indices = @transform_0, window_bounds = array<i64: 1, 1, 320>}, {transform_indices = @transform_1, window_bounds = array<i64: 1, 1, 8, 320>}, {transform_indices = @transform_2, window_bounds = array<i64: 1, 1, 8, 320>}, {pipeline_mode = #tpu.pipeline_mode<synchronous>, transform_indices = @transform_3, window_bounds = array<i64: 3, 8, 24>}, {pipeline_mode = #tpu.pipeline_mode<synchronous>, transform_indices = @transform_4, window_bounds = array<i64: 3, 8, 24>}, {transform_indices = @transform_5, window_bounds = array<i64: 1, 1, 8, 256>}]} {
    %c0 = arith.constant 0 : index
    %c0_0 = arith.constant 0 : index
    %c0_1 = arith.constant 0 : index
    %c0_2 = arith.constant 0 : index
    %0 = vector.load %arg3[%c0, %c0_0, %c0_1, %c0_2] : memref<1x1x8x320xf32, #tpu.memory_space<vmem>>, vector<1x1x8x320xf32>
    %1 = vector.shape_cast %0 : vector<1x1x8x320xf32> to vector<8x320xf32>
    %c0_3 = arith.constant 0 : index
    %c0_4 = arith.constant 0 : index
    %c0_5 = arith.constant 0 : index
    %2 = vector.load %arg5[%c0_3, %c0_4, %c0_5] : memref<3x8x24xbf16, #tpu.memory_space<vmem>>, vector<3x8x24xbf16>
    %c0_6 = arith.constant 0 : index
    %c0_7 = arith.constant 0 : index
    %c0_8 = arith.constant 0 : index
    %3 = vector.load %arg6[%c0_6, %c0_7, %c0_8] : memref<3x8x24xbf16, #tpu.memory_space<vmem>>, vector<3x8x24xbf16>
    %4 = tpu.iota {dimensions = array<i32: 1>} : vector<1x320xi32>
    %c16_i32 = arith.constant 16 : i32
    %c0_i32 = arith.constant 0 : i32
    %5 = arith.cmpi eq, %c16_i32, %c0_i32 : i32
    %c1_i32 = arith.constant 1 : i32
    %6 = arith.select %5, %c1_i32, %c16_i32 : i32
    %7 = vector.broadcast %6 : i32 to vector<1x320xi32>
    %8 = arith.remsi %4, %7 : vector<1x320xi32>
    %c0_i32_9 = arith.constant 0 : i32
    %9 = vector.broadcast %c0_i32_9 : i32 to vector<1x320xi32>
    %10 = arith.cmpi ne, %8, %9 : vector<1x320xi32>
    %c0_i32_10 = arith.constant 0 : i32
    %11 = vector.broadcast %c0_i32_10 : i32 to vector<1x320xi32>
    %12 = arith.cmpi slt, %8, %11 : vector<1x320xi32>
    %c0_i32_11 = arith.constant 0 : i32
    %13 = arith.cmpi slt, %6, %c0_i32_11 : i32
    %14 = vector.broadcast %13 : i1 to vector<1x320xi1>
    %15 = vector.broadcast %14 : vector<1x320xi1> to vector<1x320xi1>
    %16 = arith.xori %12, %15 : vector<1x320xi1>
    %17 = arith.andi %16, %10 : vector<1x320xi1>
    %18 = vector.broadcast %6 : i32 to vector<1x320xi32>
    %19 = arith.addi %8, %18 : vector<1x320xi32>
    %20 = arith.select %17, %19, %8 : vector<1x320xi1>, vector<1x320xi32>
    %c0_i32_12 = arith.constant 0 : i32
    %21 = vector.broadcast %c0_i32_12 : i32 to vector<1x320xi32>
    %22 = arith.cmpi sgt, %20, %21 : vector<1x320xi32>
    %23 = arith.extui %22 : vector<1x320xi1> to vector<1x320xi32>
    %24 = arith.sitofp %23 : vector<1x320xi32> to vector<1x320xf32>
    %c15_i32 = arith.constant 15 : i32
    %25 = vector.broadcast %c15_i32 : i32 to vector<1x320xi32>
    %26 = arith.cmpi slt, %20, %25 : vector<1x320xi32>
    %27 = arith.extui %26 : vector<1x320xi1> to vector<1x320xi32>
    %28 = arith.sitofp %27 : vector<1x320xi32> to vector<1x320xf32>
    %29 = vector.shape_cast %24 : vector<1x320xf32> to vector<1x320xf32>
    %30 = vector.broadcast %29 : vector<1x320xf32> to vector<8x320xf32>
    %31 = vector.shape_cast %28 : vector<1x320xf32> to vector<1x320xf32>
    %32 = vector.broadcast %31 : vector<1x320xf32> to vector<8x320xf32>
    %33 = vector.shape_cast %24 : vector<1x320xf32> to vector<1x320xf32>
    %34 = vector.broadcast %33 : vector<1x320xf32> to vector<8x320xf32>
    %35 = vector.shape_cast %28 : vector<1x320xf32> to vector<1x320xf32>
    %36 = vector.broadcast %35 : vector<1x320xf32> to vector<8x320xf32>
    %c0_13 = arith.constant 0 : index
    %c0_14 = arith.constant 0 : index
    %c0_15 = arith.constant 0 : index
    %37 = vector.load %arg2[%c0_13, %c0_14, %c0_15] : memref<1x1x320xf32, #tpu.memory_space<vmem>>, vector<1x1x320xf32>
    %38 = vector.shape_cast %37 : vector<1x1x320xf32> to vector<1x320xf32>
    %39 = vector.shape_cast %38 : vector<1x320xf32> to vector<1x320xf32>
    %40 = vector.broadcast %39 : vector<1x320xf32> to vector<8x320xf32>
    %cst = arith.constant 0.000000e+00 : f32
    %41 = vector.broadcast %cst : f32 to vector<8x128xf32>
    %c0_16 = arith.constant 0 : index
    %c0_17 = arith.constant 0 : index
    %42 = vector.load %arg8[%c0_16, %c0_17] : memref<8x576xf32, #tpu.memory_space<vmem>>, vector<8x128xf32>
    tpu.vector_store %arg8[%c0_16, %c0_17], %41 {strides = array<i32>} : memref<8x576xf32, #tpu.memory_space<vmem>>, vector<8x128xf32>,
    %cst_18 = arith.constant 0.000000e+00 : f32
    %43 = vector.broadcast %cst_18 : f32 to vector<8x128xf32>
    %c0_19 = arith.constant 0 : index
    %c448 = arith.constant 448 : index
    %44 = vector.load %arg8[%c0_19, %c448] : memref<8x576xf32, #tpu.memory_space<vmem>>, vector<8x128xf32>
    tpu.vector_store %arg8[%c0_19, %c448], %43 {strides = array<i32>} : memref<8x576xf32, #tpu.memory_space<vmem>>, vector<8x128xf32>,
    %cst_20 = arith.constant 0.000000e+00 : f32
    %45 = vector.broadcast %cst_20 : f32 to vector<8x128xf32>
    %c0_21 = arith.constant 0 : index
    %c0_22 = arith.constant 0 : index
    %46 = vector.load %arg9[%c0_21, %c0_22] : memref<8x576xf32, #tpu.memory_space<vmem>>, vector<8x128xf32>
    tpu.vector_store %arg9[%c0_21, %c0_22], %45 {strides = array<i32>} : memref<8x576xf32, #tpu.memory_space<vmem>>, vector<8x128xf32>,
    %cst_23 = arith.constant 0.000000e+00 : f32
    %47 = vector.broadcast %cst_23 : f32 to vector<8x128xf32>
    %c0_24 = arith.constant 0 : index
    %c448_25 = arith.constant 448 : index
    %48 = vector.load %arg9[%c0_24, %c448_25] : memref<8x576xf32, #tpu.memory_space<vmem>>, vector<8x128xf32>
    tpu.vector_store %arg9[%c0_24, %c448_25], %47 {strides = array<i32>} : memref<8x576xf32, #tpu.memory_space<vmem>>, vector<8x128xf32>,
    %c0_26 = arith.constant 0 : index
    %c0_27 = arith.constant 0 : index
    %c0_28 = arith.constant 0 : index
    %c0_29 = arith.constant 0 : index
    %49 = vector.load %arg4[%c0_26, %c0_27, %c0_28, %c0_29] : memref<1x1x8x320xbf16, #tpu.memory_space<vmem>>, vector<1x1x8x320xbf16>
    %50 = vector.shape_cast %49 : vector<1x1x8x320xbf16> to vector<8x320xbf16>
    %51 = arith.extf %50 : vector<8x320xbf16> to vector<8x320xf32>
    %c0_30 = arith.constant 0 : index
    %c128 = arith.constant 128 : index
    %52 = vector.load %arg9[%c0_30, %c128] : memref<8x576xf32, #tpu.memory_space<vmem>>, vector<8x320xf32>
    tpu.vector_store %arg9[%c0_30, %c128], %51 {strides = array<i32>} : memref<8x576xf32, #tpu.memory_space<vmem>>, vector<8x320xf32>,
    %cst_31 = arith.constant 0.000000e+00 : f32
    %53 = vector.broadcast %cst_31 : f32 to vector<8x320xf32>
    %c0_32 = arith.constant 0 : index
    %c112 = arith.constant 112 : index
    %54 = vector.load %arg9[%c0_32, %c112] : memref<8x576xf32, #tpu.memory_space<vmem>>, vector<8x320xf32>
    %c0_33 = arith.constant 0 : index
    %c111 = arith.constant 111 : index
    %55 = vector.load %arg9[%c0_33, %c111] : memref<8x576xf32, #tpu.memory_space<vmem>>, vector<8x320xf32>
    %56 = arith.mulf %55, %34 : vector<8x320xf32>
    %c0_34 = arith.constant 0 : index
    %c113 = arith.constant 113 : index
    %57 = vector.load %arg9[%c0_34, %c113] : memref<8x576xf32, #tpu.memory_space<vmem>>, vector<8x320xf32>
    %58 = arith.mulf %57, %36 : vector<8x320xf32>
    %59 = tpu.concatenate %56, %54, %58 in 0 : vector<8x320xf32>, vector<8x320xf32>, vector<8x320xf32> -> vector<24x320xf32>
    %60 = arith.truncf %59 : vector<24x320xf32> to vector<24x320xbf16>
    %61 = vector.extract_strided_slice %3 {offsets = [0, 0, 0], sizes = [1, 8, 24], strides = [1, 1, 1]} : vector<3x8x24xbf16> to vector<1x8x24xbf16>
    %62 = vector.shape_cast %61 : vector<1x8x24xbf16> to vector<8x24xbf16>
    %cst_35 = arith.constant dense<0.000000e+00> : vector<8x320xf32>
    %63 = tpu.matmul %62, %60, %cst_35 {dimension_numbers = #tpu.dot_dimension_numbers<[1], [0], [0], [1], [0, 0, 1, 1], [], []>} : vector<8x24xbf16>, vector<24x320xbf16>, vector<8x320xf32> -> vector<8x320xf32>
    %64 = arith.addf %53, %63 : vector<8x320xf32>
    %c0_36 = arith.constant 0 : index
    %c128_37 = arith.constant 128 : index
    %65 = vector.load %arg9[%c0_36, %c128_37] : memref<8x576xf32, #tpu.memory_space<vmem>>, vector<8x320xf32>
    %c0_38 = arith.constant 0 : index
    %c127 = arith.constant 127 : index
    %66 = vector.load %arg9[%c0_38, %c127] : memref<8x576xf32, #tpu.memory_space<vmem>>, vector<8x320xf32>
    %67 = arith.mulf %66, %34 : vector<8x320xf32>
    %c0_39 = arith.constant 0 : index
    %c129 = arith.constant 129 : index
    %68 = vector.load %arg9[%c0_39, %c129] : memref<8x576xf32, #tpu.memory_space<vmem>>, vector<8x320xf32>
    %69 = arith.mulf %68, %36 : vector<8x320xf32>
    %70 = tpu.concatenate %67, %65, %69 in 0 : vector<8x320xf32>, vector<8x320xf32>, vector<8x320xf32> -> vector<24x320xf32>
    %71 = arith.truncf %70 : vector<24x320xf32> to vector<24x320xbf16>
    %72 = vector.extract_strided_slice %3 {offsets = [1, 0, 0], sizes = [1, 8, 24], strides = [1, 1, 1]} : vector<3x8x24xbf16> to vector<1x8x24xbf16>
    %73 = vector.shape_cast %72 : vector<1x8x24xbf16> to vector<8x24xbf16>
    %cst_40 = arith.constant dense<0.000000e+00> : vector<8x320xf32>
    %74 = tpu.matmul %73, %71, %cst_40 {dimension_numbers = #tpu.dot_dimension_numbers<[1], [0], [0], [1], [0, 0, 1, 1], [], []>} : vector<8x24xbf16>, vector<24x320xbf16>, vector<8x320xf32> -> vector<8x320xf32>
    %75 = arith.addf %64, %74 : vector<8x320xf32>
    %c0_41 = arith.constant 0 : index
    %c144 = arith.constant 144 : index
    %76 = vector.load %arg9[%c0_41, %c144] : memref<8x576xf32, #tpu.memory_space<vmem>>, vector<8x320xf32>
    %c0_42 = arith.constant 0 : index
    %c143 = arith.constant 143 : index
    %77 = vector.load %arg9[%c0_42, %c143] : memref<8x576xf32, #tpu.memory_space<vmem>>, vector<8x320xf32>
    %78 = arith.mulf %77, %34 : vector<8x320xf32>
    %c0_43 = arith.constant 0 : index
    %c145 = arith.constant 145 : index
    %79 = vector.load %arg9[%c0_43, %c145] : memref<8x576xf32, #tpu.memory_space<vmem>>, vector<8x320xf32>
    %80 = arith.mulf %79, %36 : vector<8x320xf32>
    %81 = tpu.concatenate %78, %76, %80 in 0 : vector<8x320xf32>, vector<8x320xf32>, vector<8x320xf32> -> vector<24x320xf32>
    %82 = arith.truncf %81 : vector<24x320xf32> to vector<24x320xbf16>
    %83 = vector.extract_strided_slice %3 {offsets = [2, 0, 0], sizes = [1, 8, 24], strides = [1, 1, 1]} : vector<3x8x24xbf16> to vector<1x8x24xbf16>
    %84 = vector.shape_cast %83 : vector<1x8x24xbf16> to vector<8x24xbf16>
    %cst_44 = arith.constant dense<0.000000e+00> : vector<8x320xf32>
    %85 = tpu.matmul %84, %82, %cst_44 {dimension_numbers = #tpu.dot_dimension_numbers<[1], [0], [0], [1], [0, 0, 1, 1], [], []>} : vector<8x24xbf16>, vector<24x320xbf16>, vector<8x320xf32> -> vector<8x320xf32>
    %86 = arith.addf %75, %85 : vector<8x320xf32>
    %cst_45 = arith.constant dense<0xFF800000> : vector<320xf32>
    %87 = vector.multi_reduction <maximumf>, %1, %cst_45 [0] : vector<8x320xf32> to vector<320xf32>
    %88 = vector.shape_cast %87 : vector<320xf32> to vector<1x320xf32>
    %89 = vector.broadcast %88 : vector<1x320xf32> to vector<8x320xf32>
    %90 = arith.subf %1, %89 : vector<8x320xf32>
    %91 = math.exp %90 : vector<8x320xf32>
    %cst_46 = arith.constant dense<0.000000e+00> : vector<320xf32>
    %92 = vector.multi_reduction <add>, %91, %cst_46 [0] : vector<8x320xf32> to vector<320xf32>
    %93 = vector.shape_cast %92 : vector<320xf32> to vector<1x320xf32>
    %94 = vector.broadcast %93 : vector<1x320xf32> to vector<8x320xf32>
    %95 = arith.divf %91, %94 : vector<8x320xf32>
    %96 = arith.mulf %95, %40 : vector<8x320xf32>
    %c0_47 = arith.constant 0 : index
    %c128_48 = arith.constant 128 : index
    %97 = vector.load %arg8[%c0_47, %c128_48] : memref<8x576xf32, #tpu.memory_space<vmem>>, vector<8x320xf32>
    tpu.vector_store %arg8[%c0_47, %c128_48], %96 {strides = array<i32>} : memref<8x576xf32, #tpu.memory_space<vmem>>, vector<8x320xf32>,
    %c0_49 = arith.constant 0 : index
    %c112_50 = arith.constant 112 : index
    %98 = vector.load %arg8[%c0_49, %c112_50] : memref<8x576xf32, #tpu.memory_space<vmem>>, vector<8x320xf32>
    %c0_51 = arith.constant 0 : index
    %c111_52 = arith.constant 111 : index
    %99 = vector.load %arg8[%c0_51, %c111_52] : memref<8x576xf32, #tpu.memory_space<vmem>>, vector<8x320xf32>
    %100 = arith.mulf %99, %30 : vector<8x320xf32>
    %c0_53 = arith.constant 0 : index
    %c113_54 = arith.constant 113 : index
    %101 = vector.load %arg8[%c0_53, %c113_54] : memref<8x576xf32, #tpu.memory_space<vmem>>, vector<8x320xf32>
    %102 = arith.mulf %101, %32 : vector<8x320xf32>
    %103 = tpu.concatenate %100, %98, %102 in 0 : vector<8x320xf32>, vector<8x320xf32>, vector<8x320xf32> -> vector<24x320xf32>
    %104 = arith.truncf %103 : vector<24x320xf32> to vector<24x320xbf16>
    %105 = vector.extract_strided_slice %2 {offsets = [0, 0, 0], sizes = [1, 8, 24], strides = [1, 1, 1]} : vector<3x8x24xbf16> to vector<1x8x24xbf16>
    %106 = vector.shape_cast %105 : vector<1x8x24xbf16> to vector<8x24xbf16>
    %cst_55 = arith.constant dense<0.000000e+00> : vector<8x320xf32>
    %107 = tpu.matmul %106, %104, %cst_55 {dimension_numbers = #tpu.dot_dimension_numbers<[1], [0], [0], [1], [0, 0, 1, 1], [], []>} : vector<8x24xbf16>, vector<24x320xbf16>, vector<8x320xf32> -> vector<8x320xf32>
    %108 = arith.addf %86, %107 : vector<8x320xf32>
    %c0_56 = arith.constant 0 : index
    %c128_57 = arith.constant 128 : index
    %109 = vector.load %arg8[%c0_56, %c128_57] : memref<8x576xf32, #tpu.memory_space<vmem>>, vector<8x320xf32>
    %c0_58 = arith.constant 0 : index
    %c127_59 = arith.constant 127 : index
    %110 = vector.load %arg8[%c0_58, %c127_59] : memref<8x576xf32, #tpu.memory_space<vmem>>, vector<8x320xf32>
    %111 = arith.mulf %110, %30 : vector<8x320xf32>
    %c0_60 = arith.constant 0 : index
    %c129_61 = arith.constant 129 : index
    %112 = vector.load %arg8[%c0_60, %c129_61] : memref<8x576xf32, #tpu.memory_space<vmem>>, vector<8x320xf32>
    %113 = arith.mulf %112, %32 : vector<8x320xf32>
    %114 = tpu.concatenate %111, %109, %113 in 0 : vector<8x320xf32>, vector<8x320xf32>, vector<8x320xf32> -> vector<24x320xf32>
    %115 = arith.truncf %114 : vector<24x320xf32> to vector<24x320xbf16>
    %116 = vector.extract_strided_slice %2 {offsets = [1, 0, 0], sizes = [1, 8, 24], strides = [1, 1, 1]} : vector<3x8x24xbf16> to vector<1x8x24xbf16>
    %117 = vector.shape_cast %116 : vector<1x8x24xbf16> to vector<8x24xbf16>
    %cst_62 = arith.constant dense<0.000000e+00> : vector<8x320xf32>
    %118 = tpu.matmul %117, %115, %cst_62 {dimension_numbers = #tpu.dot_dimension_numbers<[1], [0], [0], [1], [0, 0, 1, 1], [], []>} : vector<8x24xbf16>, vector<24x320xbf16>, vector<8x320xf32> -> vector<8x320xf32>
    %119 = arith.addf %108, %118 : vector<8x320xf32>
    %c0_63 = arith.constant 0 : index
    %c144_64 = arith.constant 144 : index
    %120 = vector.load %arg8[%c0_63, %c144_64] : memref<8x576xf32, #tpu.memory_space<vmem>>, vector<8x320xf32>
    %c0_65 = arith.constant 0 : index
    %c143_66 = arith.constant 143 : index
    %121 = vector.load %arg8[%c0_65, %c143_66] : memref<8x576xf32, #tpu.memory_space<vmem>>, vector<8x320xf32>
    %122 = arith.mulf %121, %30 : vector<8x320xf32>
    %c0_67 = arith.constant 0 : index
    %c145_68 = arith.constant 145 : index
    %123 = vector.load %arg8[%c0_67, %c145_68] : memref<8x576xf32, #tpu.memory_space<vmem>>, vector<8x320xf32>
    %124 = arith.mulf %123, %32 : vector<8x320xf32>
    %125 = tpu.concatenate %122, %120, %124 in 0 : vector<8x320xf32>, vector<8x320xf32>, vector<8x320xf32> -> vector<24x320xf32>
    %126 = arith.truncf %125 : vector<24x320xf32> to vector<24x320xbf16>
    %127 = vector.extract_strided_slice %2 {offsets = [2, 0, 0], sizes = [1, 8, 24], strides = [1, 1, 1]} : vector<3x8x24xbf16> to vector<1x8x24xbf16>
    %128 = vector.shape_cast %127 : vector<1x8x24xbf16> to vector<8x24xbf16>
    %cst_69 = arith.constant dense<0.000000e+00> : vector<8x320xf32>
    %129 = tpu.matmul %128, %126, %cst_69 {dimension_numbers = #tpu.dot_dimension_numbers<[1], [0], [0], [1], [0, 0, 1, 1], [], []>} : vector<8x24xbf16>, vector<24x320xbf16>, vector<8x320xf32> -> vector<8x320xf32>
    %130 = arith.addf %119, %129 : vector<8x320xf32>
    %131 = arith.subf %1, %130 : vector<8x320xf32>
    %cst_70 = arith.constant dense<0xFF800000> : vector<320xf32>
    %132 = vector.multi_reduction <maximumf>, %131, %cst_70 [0] : vector<8x320xf32> to vector<320xf32>
    %133 = vector.shape_cast %132 : vector<320xf32> to vector<1x320xf32>
    %134 = vector.broadcast %133 : vector<1x320xf32> to vector<8x320xf32>
    %135 = arith.subf %131, %134 : vector<8x320xf32>
    %136 = math.exp %135 : vector<8x320xf32>
    %cst_71 = arith.constant dense<0.000000e+00> : vector<320xf32>
    %137 = vector.multi_reduction <add>, %136, %cst_71 [0] : vector<8x320xf32> to vector<320xf32>
    %138 = vector.shape_cast %137 : vector<320xf32> to vector<1x320xf32>
    %139 = vector.broadcast %138 : vector<1x320xf32> to vector<8x320xf32>
    %140 = arith.divf %136, %139 : vector<8x320xf32>
    %141 = arith.mulf %140, %40 : vector<8x320xf32>
    %c0_72 = arith.constant 0 : index
    %c128_73 = arith.constant 128 : index
    %142 = vector.load %arg8[%c0_72, %c128_73] : memref<8x576xf32, #tpu.memory_space<vmem>>, vector<8x320xf32>
    tpu.vector_store %arg8[%c0_72, %c128_73], %141 {strides = array<i32>} : memref<8x576xf32, #tpu.memory_space<vmem>>, vector<8x320xf32>,
    %c0_74 = arith.constant 0 : index
    %c112_75 = arith.constant 112 : index
    %143 = vector.load %arg8[%c0_74, %c112_75] : memref<8x576xf32, #tpu.memory_space<vmem>>, vector<8x320xf32>
    %c0_76 = arith.constant 0 : index
    %c111_77 = arith.constant 111 : index
    %144 = vector.load %arg8[%c0_76, %c111_77] : memref<8x576xf32, #tpu.memory_space<vmem>>, vector<8x320xf32>
    %145 = arith.mulf %144, %30 : vector<8x320xf32>
    %c0_78 = arith.constant 0 : index
    %c113_79 = arith.constant 113 : index
    %146 = vector.load %arg8[%c0_78, %c113_79] : memref<8x576xf32, #tpu.memory_space<vmem>>, vector<8x320xf32>
    %147 = arith.mulf %146, %32 : vector<8x320xf32>
    %148 = tpu.concatenate %145, %143, %147 in 0 : vector<8x320xf32>, vector<8x320xf32>, vector<8x320xf32> -> vector<24x320xf32>
    %149 = arith.truncf %148 : vector<24x320xf32> to vector<24x320xbf16>
    %150 = vector.extract_strided_slice %2 {offsets = [0, 0, 0], sizes = [1, 8, 24], strides = [1, 1, 1]} : vector<3x8x24xbf16> to vector<1x8x24xbf16>
    %151 = vector.shape_cast %150 : vector<1x8x24xbf16> to vector<8x24xbf16>
    %cst_80 = arith.constant dense<0.000000e+00> : vector<8x320xf32>
    %152 = tpu.matmul %151, %149, %cst_80 {dimension_numbers = #tpu.dot_dimension_numbers<[1], [0], [0], [1], [0, 0, 1, 1], [], []>} : vector<8x24xbf16>, vector<24x320xbf16>, vector<8x320xf32> -> vector<8x320xf32>
    %153 = arith.addf %86, %152 : vector<8x320xf32>
    %c0_81 = arith.constant 0 : index
    %c128_82 = arith.constant 128 : index
    %154 = vector.load %arg8[%c0_81, %c128_82] : memref<8x576xf32, #tpu.memory_space<vmem>>, vector<8x320xf32>
    %c0_83 = arith.constant 0 : index
    %c127_84 = arith.constant 127 : index
    %155 = vector.load %arg8[%c0_83, %c127_84] : memref<8x576xf32, #tpu.memory_space<vmem>>, vector<8x320xf32>
    %156 = arith.mulf %155, %30 : vector<8x320xf32>
    %c0_85 = arith.constant 0 : index
    %c129_86 = arith.constant 129 : index
    %157 = vector.load %arg8[%c0_85, %c129_86] : memref<8x576xf32, #tpu.memory_space<vmem>>, vector<8x320xf32>
    %158 = arith.mulf %157, %32 : vector<8x320xf32>
    %159 = tpu.concatenate %156, %154, %158 in 0 : vector<8x320xf32>, vector<8x320xf32>, vector<8x320xf32> -> vector<24x320xf32>
    %160 = arith.truncf %159 : vector<24x320xf32> to vector<24x320xbf16>
    %161 = vector.extract_strided_slice %2 {offsets = [1, 0, 0], sizes = [1, 8, 24], strides = [1, 1, 1]} : vector<3x8x24xbf16> to vector<1x8x24xbf16>
    %162 = vector.shape_cast %161 : vector<1x8x24xbf16> to vector<8x24xbf16>
    %cst_87 = arith.constant dense<0.000000e+00> : vector<8x320xf32>
    %163 = tpu.matmul %162, %160, %cst_87 {dimension_numbers = #tpu.dot_dimension_numbers<[1], [0], [0], [1], [0, 0, 1, 1], [], []>} : vector<8x24xbf16>, vector<24x320xbf16>, vector<8x320xf32> -> vector<8x320xf32>
    %164 = arith.addf %153, %163 : vector<8x320xf32>
    %c0_88 = arith.constant 0 : index
    %c144_89 = arith.constant 144 : index
    %165 = vector.load %arg8[%c0_88, %c144_89] : memref<8x576xf32, #tpu.memory_space<vmem>>, vector<8x320xf32>
    %c0_90 = arith.constant 0 : index
    %c143_91 = arith.constant 143 : index
    %166 = vector.load %arg8[%c0_90, %c143_91] : memref<8x576xf32, #tpu.memory_space<vmem>>, vector<8x320xf32>
    %167 = arith.mulf %166, %30 : vector<8x320xf32>
    %c0_92 = arith.constant 0 : index
    %c145_93 = arith.constant 145 : index
    %168 = vector.load %arg8[%c0_92, %c145_93] : memref<8x576xf32, #tpu.memory_space<vmem>>, vector<8x320xf32>
    %169 = arith.mulf %168, %32 : vector<8x320xf32>
    %170 = tpu.concatenate %167, %165, %169 in 0 : vector<8x320xf32>, vector<8x320xf32>, vector<8x320xf32> -> vector<24x320xf32>
    %171 = arith.truncf %170 : vector<24x320xf32> to vector<24x320xbf16>
    %172 = vector.extract_strided_slice %2 {offsets = [2, 0, 0], sizes = [1, 8, 24], strides = [1, 1, 1]} : vector<3x8x24xbf16> to vector<1x8x24xbf16>
    %173 = vector.shape_cast %172 : vector<1x8x24xbf16> to vector<8x24xbf16>
    %cst_94 = arith.constant dense<0.000000e+00> : vector<8x320xf32>
    %174 = tpu.matmul %173, %171, %cst_94 {dimension_numbers = #tpu.dot_dimension_numbers<[1], [0], [0], [1], [0, 0, 1, 1], [], []>} : vector<8x24xbf16>, vector<24x320xbf16>, vector<8x320xf32> -> vector<8x320xf32>
    %175 = arith.addf %164, %174 : vector<8x320xf32>
    %176 = arith.subf %1, %175 : vector<8x320xf32>
    %cst_95 = arith.constant dense<0xFF800000> : vector<320xf32>
    %177 = vector.multi_reduction <maximumf>, %176, %cst_95 [0] : vector<8x320xf32> to vector<320xf32>
    %178 = vector.shape_cast %177 : vector<320xf32> to vector<1x320xf32>
    %179 = vector.broadcast %178 : vector<1x320xf32> to vector<8x320xf32>
    %180 = arith.subf %176, %179 : vector<8x320xf32>
    %181 = math.exp %180 : vector<8x320xf32>
    %cst_96 = arith.constant dense<0.000000e+00> : vector<320xf32>
    %182 = vector.multi_reduction <add>, %181, %cst_96 [0] : vector<8x320xf32> to vector<320xf32>
    %183 = vector.shape_cast %182 : vector<320xf32> to vector<1x320xf32>
    %184 = vector.broadcast %183 : vector<1x320xf32> to vector<8x320xf32>
    %185 = arith.divf %181, %184 : vector<8x320xf32>
    %186 = vector.extract_strided_slice %185 {offsets = [0, 32], sizes = [8, 256], strides = [1, 1]} : vector<8x320xf32> to vector<8x256xf32>
    %c0_97 = arith.constant 0 : index
    %c0_98 = arith.constant 0 : index
    %c0_99 = arith.constant 0 : index
    %c0_100 = arith.constant 0 : index
    %187 = vector.load %arg7[%c0_97, %c0_98, %c0_99, %c0_100] : memref<1x1x8x256xf32, #tpu.memory_space<vmem>>, vector<1x1x8x256xf32>
    %188 = vector.shape_cast %187 : vector<1x1x8x256xf32> to vector<8x256xf32>
    %189 = vector.shape_cast %186 : vector<8x256xf32> to vector<1x1x8x256xf32>
    tpu.vector_store %arg7[%c0_97, %c0_98, %c0_99, %c0_100], %189 {strides = array<i32>} : memref<1x1x8x256xf32, #tpu.memory_space<vmem>>, vector<1x1x8x256xf32>,
    return
  }
  func.func @transform_0(%arg0: i32, %arg1: i32) -> (i32, i32, i32) {
    %c0_i32 = arith.constant 0 : i32
    %c0_i32_0 = arith.constant 0 : i32
    %c0_i32_1 = arith.constant 0 : i32
    return %arg0, %c0_i32, %c0_i32_0 : i32, i32, i32
  }
  func.func @transform_1(%arg0: i32, %arg1: i32) -> (i32, i32, i32, i32) {
    %c0_i32 = arith.constant 0 : i32
    %c0_i32_0 = arith.constant 0 : i32
    %c0_i32_1 = arith.constant 0 : i32
    return %arg1, %arg0, %c0_i32, %c0_i32_0 : i32, i32, i32, i32
  }
  func.func @transform_2(%arg0: i32, %arg1: i32) -> (i32, i32, i32, i32) {
    %c0_i32 = arith.constant 0 : i32
    %c0_i32_0 = arith.constant 0 : i32
    %c0_i32_1 = arith.constant 0 : i32
    return %arg1, %arg0, %c0_i32, %c0_i32_0 : i32, i32, i32, i32
  }
  func.func @transform_3(%arg0: i32, %arg1: i32) -> (i32, i32, i32) {
    %c0_i32 = arith.constant 0 : i32
    %c0_i32_0 = arith.constant 0 : i32
    %c0_i32_1 = arith.constant 0 : i32
    %c0_i32_2 = arith.constant 0 : i32
    return %c0_i32, %c0_i32_0, %c0_i32_1 : i32, i32, i32
  }
  func.func @transform_4(%arg0: i32, %arg1: i32) -> (i32, i32, i32) {
    %c0_i32 = arith.constant 0 : i32
    %c0_i32_0 = arith.constant 0 : i32
    %c0_i32_1 = arith.constant 0 : i32
    %c0_i32_2 = arith.constant 0 : i32
    return %c0_i32, %c0_i32_0, %c0_i32_1 : i32, i32, i32
  }
  func.func @transform_5(%arg0: i32, %arg1: i32) -> (i32, i32, i32, i32) {
    %c0_i32 = arith.constant 0 : i32
    %c0_i32_0 = arith.constant 0 : i32
    %c0_i32_1 = arith.constant 0 : i32
    return %arg1, %arg0, %c0_i32, %c0_i32_0 : i32, i32, i32, i32
  }
}

</mosaic_0001>

<llo_original>
// kernel: tpu_custom_call.1
$region0: #{tpu_custom_call.1}
  #allocation0 [shape = 'u32[]', space=smem, size = 0x4, offset = 0x4, fixed_abs, tag = 'smem constant byte address 0x4 - core index']
  #allocation1 [shape = 'u32[144,128]{1,0:T(1,128)}', space=vmem, size = 0x12000, scoped, tag = 'internal scratch']
  #allocation2 [shape = 'f32[8,576]{1,0:T(8,128)}', space=vmem, size = 0x5000, scoped, tag = 'scratch operand']
  #allocation3 [shape = 'f32[8,576]{1,0:T(8,128)}', space=vmem, size = 0x5000, scoped, tag = 'scratch operand']
  %s0 = inlined_call_operand.hbm [shape: f32[1,1,320], index: 0, kind: input, shape index: {}]
  %s1 = inlined_call_operand.hbm [shape: f32[2,1,8,320], index: 1, kind: input, shape index: {}]
  %s2 = inlined_call_operand.hbm [shape: bf16[2,1,8,320], index: 2, kind: input, shape index: {}]
  %s3 = inlined_call_operand.hbm [shape: bf16[3,8,24], index: 3, kind: input, shape index: {}]
  %s4 = inlined_call_operand.vmem [shape: bf16[3,8,24], index: 4, kind: input, shape index: {}]
  %s5 = inlined_call_operand.hbm [shape: f32[2,1,8,256], index: 5, kind: output, shape index: {}]
  %s6 = sld [smem:[#allocation0]]
  $region69: #{tpu_custom_call.1} parent=0
    _
  %s8 = ssub.s32 1, %s6
  %s9 = scalar_select 0, %s8, %s6
  $region1: #{tpu_custom_call.1} parent=0
    #allocation4 [shape = 'u8[1536]{0}', space=vmem, size = 0x800, scoped, tag = 'input window, operand 0, single buffered']
    #allocation5 [shape = 's32[2]{0}', space=sflag, size = 0x8, scoped, tag = 'scoped memory for tpu_custom_call.1']
    #allocation6 [shape = 's32[2]{0}', space=sflag, size = 0x8, scoped, tag = 'scoped memory for tpu_custom_call.1']
    #allocation7 [shape = 'u8[24576]{0}', space=vmem, size = 0x6000, scoped, tag = 'input window, operand 1']
    #allocation8 [shape = 's32[2]{0}', space=sflag, size = 0x8, scoped, tag = 'scoped memory for tpu_custom_call.1']
    #allocation9 [shape = 'u8[12288]{0}', space=vmem, size = 0x3000, scoped, tag = 'input window, operand 2']
    #allocation10 [shape = 'u8[6144]{0}', space=vmem, size = 0x1800, scoped, tag = 'input window, operand 3, single buffered']
    #allocation11 [shape = 's32[1]{0}', space=sflag, size = 0x4, scoped, tag = 'scoped memory for tpu_custom_call.1']
    #allocation12 [shape = 'u8[16384]{0}', space=vmem, size = 0x4000, scoped, tag = 'output window, operand 0']
    %10 = vsyncpa [#allocation5], 0
    %11 = vsyncpa [#allocation8], 0
    %s12 = scalar_lea.sflag [#allocation8], 1
    %13 = vsyncpa %s12, 0
    %14 = vsyncpa [#allocation11], 0
    %15 = vsyncpa [#allocation6], 0
    %s16 = scalar_lea.sflag [#allocation6], 1
    %17 = vsyncpa %s16, 0
    loop: start=0, step=1, limit=4
    $region2: #{tpu_custom_call.1} parent=1 // loop_pre_header
      _
    $region3: #{tpu_custom_call.1} parent=1 // loop_header
      %s19 = sphi 0, %s23
      %p20 = scmp.ge.s32.totalorder %s19, 4
      %s26 = sphi 0, %s38
      %s27 = sphi 0, %s34
      %s28 = sphi 0, %s26
      %s29 = sphi 0, %s27
      %s30 = sphi 0, %s28
      %s31 = sphi 0, %s29
      %s41 = sphi 0, %s43
      %s44 = sphi 0, %s41
      %s45 = sphi 0, %s44
      %s61 = sphi 0, %s45
      %s69 = sphi 0, %s71
      %s72 = sphi 0, %s69
      %s73 = sphi 0, %s72
      %s89 = sphi 0, %s73
      %s97 = sphi 0, %s99
      %s100 = sphi 0, %s97
      %s101 = sphi 0, %s100
      %s117 = sphi 0, %s101
      %s121 = sphi 0, %s121
      %s123 = sphi 0, %s121
      %s124 = sphi 0, %s123
      %s138 = sphi 0, %s124
      %s142 = sphi 0, %s142
      %s144 = sphi 0, %s142
      %s145 = sphi 0, %s144
      %s159 = sphi 0, %s145
      %s167 = sphi 0, %s169
      %s170 = sphi 0, %s167
      %s171 = sphi 0, %s170
      %s187 = sphi 0, %s171
    $region4: #{tpu_custom_call.1} parent=1 // loop_header_branch
      %22 = sbr.rel (%p20) target = $region8
    $region5: #{tpu_custom_call.1} parent=1 // loop_body
      %s24 = ssub.s32 %s19, 1
      %s25 = ssub.s32 %s19, 2
      %s32 = sadd.s32 1, %s27
      %p33 = scmp.ge.s32.totalorder %s32, 2
      %s34 = scalar_select %p33, 0, %s32
      %s35 = sadd.s32 1, %s26
      %s36 = scalar_select %p33, %s35, %s26
      %p37 = scmp.ge.s32.totalorder %s36, 1
      %s38 = scalar_select %p37, 0, %s36
      %s39 = ssub.s32 %s26, %s38
      %p40 = scmp.eq.s32.totalorder %s39, 0
      %s42 = sadd.s32 %s41, 1
      %s43 = scalar_select %p40, %s41, %s42
      %p46 = pneg %p40
      %p47 = scmp.eq.s32.totalorder %s19, 1
      %p48 = por %p46, %p47
      %p49 = scmp.ne.s32.totalorder %s41, %s44
      %p50 = scmp.eq.s32.totalorder %s19, 0
      %p51 = por %p49, %p50
      %p52 = scmp.ne.s32.totalorder %s41, %s44
      %p53 = scmp.eq.s32.totalorder %s24, 1
      %p54 = por %p52, %p53
      %p55 = scmp.ne.s32.totalorder %s44, %s45
      %p56 = scmp.eq.s32.totalorder %s24, 0
      %p57 = por %p55, %p56
      %p58 = scmp.ne.s32.totalorder %s44, %s45
      %p59 = scmp.eq.s32.totalorder %s25, 1
      %p60 = por %p58, %p59
      %p62 = scmp.ne.s32.totalorder %s45, %s61
      %p63 = scmp.eq.s32.totalorder %s25, 0
      %p64 = por %p62, %p63
      %s65 = ssub.s32 %s27, %s34
      %s66 = ssub.s32 %s26, %s38
      %s67 = sor.u32 %s65, %s66
      %p68 = scmp.eq.s32.totalorder %s67, 0
      %s70 = sadd.s32 %s69, 1
      %s71 = scalar_select %p68, %s69, %s70
      %p74 = pneg %p68
      %p75 = scmp.eq.s32.totalorder %s19, 1
      %p76 = por %p74, %p75
      %p77 = scmp.ne.s32.totalorder %s69, %s72
      %p78 = scmp.eq.s32.totalorder %s19, 0
      %p79 = por %p77, %p78
      %p80 = scmp.ne.s32.totalorder %s69, %s72
      %p81 = scmp.eq.s32.totalorder %s24, 1
      %p82 = por %p80, %p81
      %p83 = scmp.ne.s32.totalorder %s72, %s73
      %p84 = scmp.eq.s32.totalorder %s24, 0
      %p85 = por %p83, %p84
      %p86 = scmp.ne.s32.totalorder %s72, %s73
      %p87 = scmp.eq.s32.totalorder %s25, 1
      %p88 = por %p86, %p87
      %p90 = scmp.ne.s32.totalorder %s73, %s89
      %p91 = scmp.eq.s32.totalorder %s25, 0
      %p92 = por %p90, %p91
      %s93 = ssub.s32 %s27, %s34
      %s94 = ssub.s32 %s26, %s38
      %s95 = sor.u32 %s93, %s94
      %p96 = scmp.eq.s32.totalorder %s95, 0
      %s98 = sadd.s32 %s97, 1
      %s99 = scalar_select %p96, %s97, %s98
      %p102 = pneg %p96
      %p103 = scmp.eq.s32.totalorder %s19, 1
      %p104 = por %p102, %p103
      %p105 = scmp.ne.s32.totalorder %s97, %s100
      %p106 = scmp.eq.s32.totalorder %s19, 0
      %p107 = por %p105, %p106
      %p108 = scmp.ne.s32.totalorder %s97, %s100
      %p109 = scmp.eq.s32.totalorder %s24, 1
      %p110 = por %p108, %p109
      %p111 = scmp.ne.s32.totalorder %s100, %s101
      %p112 = scmp.eq.s32.totalorder %s24, 0
      %p113 = por %p111, %p112
      %p114 = scmp.ne.s32.totalorder %s100, %s101
      %p115 = scmp.eq.s32.totalorder %s25, 1
      %p116 = por %p114, %p115
      %p118 = scmp.ne.s32.totalorder %s101, %s117
      %p119 = scmp.eq.s32.totalorder %s25, 0
      %p120 = por %p118, %p119
      %s122 = sadd.s32 %s121, 1
      %p125 = scmp.eq.s32.totalorder %s19, 1
      %p126 = scmp.ne.s32.totalorder %s121, %s123
      %p127 = scmp.eq.s32.totalorder %s19, 0
      %p128 = por %p126, %p127
      %p129 = scmp.ne.s32.totalorder %s121, %s123
      %p130 = scmp.eq.s32.totalorder %s24, 1
      %p131 = por %p129, %p130
      %p132 = scmp.ne.s32.totalorder %s123, %s124
      %p133 = scmp.eq.s32.totalorder %s24, 0
      %p134 = por %p132, %p133
      %p135 = scmp.ne.s32.totalorder %s123, %s124
      %p136 = scmp.eq.s32.totalorder %s25, 1
      %p137 = por %p135, %p136
      %p139 = scmp.ne.s32.totalorder %s124, %s138
      %p140 = scmp.eq.s32.totalorder %s25, 0
      %p141 = por %p139, %p140
      %s143 = sadd.s32 %s142, 1
      %p146 = scmp.eq.s32.totalorder %s19, 1
      %p147 = scmp.ne.s32.totalorder %s142, %s144
      %p148 = scmp.eq.s32.totalorder %s19, 0
      %p149 = por %p147, %p148
      %p150 = scmp.ne.s32.totalorder %s142, %s144
      %p151 = scmp.eq.s32.totalorder %s24, 1
      %p152 = por %p150, %p151
      %p153 = scmp.ne.s32.totalorder %s144, %s145
      %p154 = scmp.eq.s32.totalorder %s24, 0
      %p155 = por %p153, %p154
      %p156 = scmp.ne.s32.totalorder %s144, %s145
      %p157 = scmp.eq.s32.totalorder %s25, 1
      %p158 = por %p156, %p157
      %p160 = scmp.ne.s32.totalorder %s145, %s159
      %p161 = scmp.eq.s32.totalorder %s25, 0
      %p162 = por %p160, %p161
      %s163 = ssub.s32 %s27, %s34
      %s164 = ssub.s32 %s26, %s38
      %s165 = sor.u32 %s163, %s164
      %p166 = scmp.eq.s32.totalorder %s165, 0
      %s168 = sadd.s32 %s167, 1
      %s169 = scalar_select %p166, %s167, %s168
      %p172 = pneg %p166
      %p173 = scmp.eq.s32.totalorder %s19, 1
      %p174 = por %p172, %p173
      %p175 = scmp.ne.s32.totalorder %s167, %s170
      %p176 = scmp.eq.s32.totalorder %s19, 0
      %p177 = por %p175, %p176
      %p178 = scmp.ne.s32.totalorder %s167, %s170
      %p179 = scmp.eq.s32.totalorder %s24, 1
      %p180 = por %p178, %p179
      %p181 = scmp.ne.s32.totalorder %s170, %s171
      %p182 = scmp.eq.s32.totalorder %s24, 0
      %p183 = por %p181, %p182
      %p184 = scmp.ne.s32.totalorder %s170, %s171
      %p185 = scmp.eq.s32.totalorder %s25, 1
      %p186 = por %p184, %p185
      %p188 = scmp.ne.s32.totalorder %s171, %s187
      %p189 = scmp.eq.s32.totalorder %s25, 0
      %p190 = por %p188, %p189
      %p191 = scmp.le.s32.totalorder 1, %s19
      %p192 = scmp.lt.s32.totalorder %s19, 3
      %p193 = pnand %p191, %p192
      %p194 = pneg %p193
      // Predicated region
      $region9: #{tpu_custom_call.1} parent=5 // pred_check
        _
      $region10: #{tpu_custom_call.1} parent=5 // pred_check_branch
        %196 = sbr.rel (%p193) target = $region12
      $region11: #{tpu_custom_call.1} parent=5 // pred_region
        %s197 = ssub.s32 %s19, 1
        // Predicated region
        $region13: #{tpu_custom_call.1} parent=11 // pred_check
          %p198 = pneg %p57
        $region14: #{tpu_custom_call.1} parent=11 // pred_check_branch
          %200 = sbr.rel (%p198) target = $region16
        $region15: #{tpu_custom_call.1} parent=11 // pred_region
          %s202 = ssub.s32 48, 48
          %203 = vsyncadd [#allocation5], %s202
          %s204 = smul.addr %s28, 3
          %s205 = smul.addr %s204, 16
          %s206 = scalar_lea.hbm %s0, %s205
          %s208 = sshll.u32 [#allocation4], 4
          %s209 = int_to_ptr.vmem [resolvable:$true] %s208
          %211 = dma.hbm_to_vmem [thread:$0]  %s206, 48, %s209, [#allocation5]
        $region16: #{tpu_custom_call.1} parent=11 // pred_fallthru
          _
        // Predicated region
        $region17: #{tpu_custom_call.1} parent=11 // pred_check
          %p212 = pneg %p134
        $region18: #{tpu_custom_call.1} parent=11 // pred_check_branch
          %214 = sbr.rel (%p212) target = $region20
        $region19: #{tpu_custom_call.1} parent=11 // pred_region
          %s216 = ssub.s32 192, 192
          %217 = vsyncadd [#allocation11], %s216
          %s218 = sshll.u32 [#allocation10], 4
          %s219 = int_to_ptr.vmem [resolvable:$true] %s218
          %224 = dma.hbm_to_vmem [thread:$0]  %s3, 192, %s219, [#allocation11], 64, 64, 4
        $region20: #{tpu_custom_call.1} parent=11 // pred_fallthru
          _
        // Predicated region
        $region21: #{tpu_custom_call.1} parent=11 // pred_check
          %p225 = pneg %p155
        $region22: #{tpu_custom_call.1} parent=11 // pred_check_branch
          %227 = sbr.rel (%p225) target = $region24
        $region23: #{tpu_custom_call.1} parent=11 // pred_region
          _
        $region24: #{tpu_custom_call.1} parent=11 // pred_fallthru
          _
      $region12: #{tpu_custom_call.1} parent=5 // pred_fallthru
        _
      %p228 = scmp.lt.s32.totalorder %s19, 2
      // Predicated region
      $region25: #{tpu_custom_call.1} parent=5 // pred_check
        %p229 = pneg %p228
      $region26: #{tpu_custom_call.1} parent=5 // pred_check_branch
        %231 = sbr.rel (%p229) target = $region28
      $region27: #{tpu_custom_call.1} parent=5 // pred_region
        // Predicated region
        $region29: #{tpu_custom_call.1} parent=27 // pred_check
          %p232 = pneg %p79
        $region30: #{tpu_custom_call.1} parent=27 // pred_check_branch
          %234 = sbr.rel (%p232) target = $region32
        $region31: #{tpu_custom_call.1} parent=27 // pred_region
          %s235 = sand.u32 %s19, 1
          %s236 = scalar_lea.sflag [#allocation8], %s235
          %s237 = sand.u32 %s69, 1
          %s238 = smul.addr %s237, 24
          %s239 = scalar_lea.vmem [#allocation7], %s238
          %s241 = ssub.s32 384, 384
          %242 = vsyncadd %s236, %s241
          %s243 = smul.addr %s26, 3
          %s244 = smul.addr %s27, 3
          %s245 = sadd.s32 %s243, %s244
          %s246 = smul.addr %s245, 128
          %s247 = scalar_lea.hbm %s1, %s246
          %s249 = sshll.u32 %s239, 4
          %s250 = int_to_ptr.vmem [resolvable:$true] %s249
          %252 = dma.hbm_to_vmem [thread:$0]  %s247, 384, %s250, %s236
        $region32: #{tpu_custom_call.1} parent=27 // pred_fallthru
          _
        // Predicated region
        $region33: #{tpu_custom_call.1} parent=27 // pred_check
          %p253 = pneg %p107
        $region34: #{tpu_custom_call.1} parent=27 // pred_check_branch
          %255 = sbr.rel (%p253) target = $region36
        $region35: #{tpu_custom_call.1} parent=27 // pred_region
          %s256 = sand.u32 %s19, 1
          %s257 = scalar_lea.sflag [#allocation8], %s256
          %s258 = sand.u32 %s97, 1
          %s259 = smul.addr %s258, 12
          %s260 = scalar_lea.vmem [#allocation9], %s259
          %s262 = ssub.s32 192, 192
          %263 = vsyncadd %s257, %s262
          %s264 = smul.addr %s26, 3
          %s265 = smul.addr %s27, 3
          %s266 = sadd.s32 %s264, %s265
          %s267 = smul.addr %s266, 64
          %s268 = scalar_lea.hbm %s2, %s267
          %s270 = sshll.u32 %s260, 4
          %s271 = int_to_ptr.vmem [resolvable:$true] %s270
          %273 = dma.hbm_to_vmem [thread:$0]  %s268, 192, %s271, %s257
        $region36: #{tpu_custom_call.1} parent=27 // pred_fallthru
          _
      $region28: #{tpu_custom_call.1} parent=5 // pred_fallthru
        _
      %p274 = scmp.le.s32.totalorder 1, %s19
      %p275 = scmp.lt.s32.totalorder %s19, 3
      %p276 = pnand %p274, %p275
      %p277 = pneg %p276
      // Predicated region
      $region37: #{tpu_custom_call.1} parent=5 // pred_check
        _
      $region38: #{tpu_custom_call.1} parent=5 // pred_check_branch
        %279 = sbr.rel (%p276) target = $region40
      $region39: #{tpu_custom_call.1} parent=5 // pred_region
        %s280 = ssub.s32 %s19, 1
        // Predicated region
        $region41: #{tpu_custom_call.1} parent=39 // pred_check
          %p281 = pneg %p57
        $region42: #{tpu_custom_call.1} parent=39 // pred_check_branch
          %283 = sbr.rel (%p281) target = $region44
        $region43: #{tpu_custom_call.1} parent=39 // pred_region
          %284 = dma.done [#allocation5], 48
        $region44: #{tpu_custom_call.1} parent=39 // pred_fallthru
          _
        %s285 = sand.u32 %s24, 1
        %s286 = scalar_lea.sflag [#allocation8], %s285
        %s287 = sand.u32 %s72, 1
        %s288 = smul.addr %s287, 24
        %s289 = scalar_lea.vmem [#allocation7], %s288
        // Predicated region
        $region45: #{tpu_custom_call.1} parent=39 // pred_check
          %p290 = pneg %p85
        $region46: #{tpu_custom_call.1} parent=39 // pred_check_branch
          %292 = sbr.rel (%p290) target = $region48
        $region47: #{tpu_custom_call.1} parent=39 // pred_region
          %293 = dma.done %s286, 384
        $region48: #{tpu_custom_call.1} parent=39 // pred_fallthru
          _
        %s294 = sand.u32 %s24, 1
        %s295 = scalar_lea.sflag [#allocation8], %s294
        %s296 = sand.u32 %s100, 1
        %s297 = smul.addr %s296, 12
        %s298 = scalar_lea.vmem [#allocation9], %s297
        // Predicated region
        $region49: #{tpu_custom_call.1} parent=39 // pred_check
          %p299 = pneg %p113
        $region50: #{tpu_custom_call.1} parent=39 // pred_check_branch
          %301 = sbr.rel (%p299) target = $region52
        $region51: #{tpu_custom_call.1} parent=39 // pred_region
          %302 = dma.done %s295, 192
        $region52: #{tpu_custom_call.1} parent=39 // pred_fallthru
          _
        // Predicated region
        $region53: #{tpu_custom_call.1} parent=39 // pred_check
          %p303 = pneg %p134
        $region54: #{tpu_custom_call.1} parent=39 // pred_check_branch
          %305 = sbr.rel (%p303) target = $region56
        $region55: #{tpu_custom_call.1} parent=39 // pred_region
          %306 = dma.done [#allocation11], 192
        $region56: #{tpu_custom_call.1} parent=39 // pred_fallthru
          _
        %p307 = pneg %p57
        %p308 = pneg %p54
        %s309 = sand.u32 %s24, 1
        %s310 = scalar_lea.sflag [#allocation8], %s309
        %s311 = sand.u32 %s72, 1
        %s312 = smul.addr %s311, 24
        %s313 = scalar_lea.vmem [#allocation7], %s312
        %p314 = pneg %p85
        %p315 = pneg %p82
        %s316 = sand.u32 %s24, 1
        %s317 = scalar_lea.sflag [#allocation8], %s316
        %s318 = sand.u32 %s100, 1
        %s319 = smul.addr %s318, 12
        %s320 = scalar_lea.vmem [#allocation9], %s319
        %p321 = pneg %p113
        %p322 = pneg %p110
        %p323 = pneg %p134
        %p324 = pneg %p131
        %p325 = pneg %p155
        %p326 = pneg %p152
        %p327 = pneg %p183
        %p328 = pneg %p180
        %s329 = sand.u32 %s170, 1
        %s330 = scalar_lea.sflag [#allocation6], %s329
        %s331 = sand.u32 %s170, 1
        %s332 = smul.addr %s331, 16
        %s333 = scalar_lea.vmem [#allocation12], %s332
        %v335 = vld [vmem:[%s289] sm:$0xff]
        %v336 = vld [vmem:[%s289 + $0x8] sm:$0xff]
        %v337 = vld [vmem:[%s289 + $0x10] sm:$0xff]
        %v338 = vld [vmem:[#allocation10] sm:$0xf]
        %v339 = vld [vmem:[#allocation10 + $0x4] sm:$0xf]
        %v340 = vld [vmem:[#allocation10 + $0x8] sm:$0xf]
        %v341 = vld [vmem:[%s4] sm:$0xf]
        %v342 = vld [vmem:[%s4 + $0x4] sm:$0xf]
        %v343 = vld [vmem:[%s4 + $0x8] sm:$0xf]
        %v344 = vlaneseq
        %v345 = vand.u32 %v344, 127
        %v346 = vadd.s32 %v345, 128
        %v347 = vadd.s32 %v345, 256
        %vm348 = vcmp.lt.s32.totalorder %v345, 0
        %v349 = vsub.s32 0, %v345
        %v350 = vsel %vm348, %v349, %v345
        %v351 = vshrl.u32 %v350, 4
        %v352 = vand.u32 %v350, 15
        %v353 = vsub.s32 0, %v352
        %v354 = vsel %vm348, %v353, %v352
        %vm355 = vcmp.lt.s32.totalorder %v346, 0
        %v356 = vsub.s32 0, %v346
        %v357 = vsel %vm355, %v356, %v346
        %v358 = vshrl.u32 %v357, 4
        %v359 = vand.u32 %v357, 15
        %v360 = vsub.s32 0, %v359
        %v361 = vsel %vm355, %v360, %v359
        %vm362 = vcmp.lt.s32.totalorder %v347, 0
        %v363 = vsub.s32 0, %v347
        %v364 = vsel %vm362, %v363, %v347
        %v365 = vshrl.u32 %v364, 4
        %v366 = vand.u32 %v364, 15
        %v367 = vsub.s32 0, %v366
        %v368 = vsel %vm362, %v367, %v366
        %vm369 = vcmp.ne.s32.totalorder %v354, 0
        %vm370 = vcmp.ne.s32.totalorder %v361, 0
        %vm371 = vcmp.ne.s32.totalorder %v368, 0
        %vm372 = vcmp.lt.s32.totalorder %v354, 0
        %vm373 = vcmp.lt.s32.totalorder %v361, 0
        %vm374 = vcmp.lt.s32.totalorder %v368, 0
        %vm375 = vmand %vm372, %vm369
        %vm376 = vmand %vm373, %vm370
        %vm377 = vmand %vm374, %vm371
        %v378 = vadd.s32 %v354, 16
        %v379 = vadd.s32 %v361, 16
        %v380 = vadd.s32 %v368, 16
        %v381 = vsel %vm375, %v378, %v354
        %v382 = vsel %vm376, %v379, %v361
        %v383 = vsel %vm377, %v380, %v368
        %vm384 = vcmp.gt.s32.totalorder %v381, 0
        %vm385 = vcmp.gt.s32.totalorder %v382, 0
        %vm386 = vcmp.gt.s32.totalorder %v383, 0
        %v387 = vsel %vm384, 1, 0
        %v388 = vsel %vm385, 1, 0
        %v389 = vsel %vm386, 1, 0
        %v390 = vcvt.s32.f32 %v387
        %v391 = vcvt.s32.f32 %v388
        %v392 = vcvt.s32.f32 %v389
        %vm393 = vcmp.lt.s32.totalorder %v381, 15
        %vm394 = vcmp.lt.s32.totalorder %v382, 15
        %vm395 = vcmp.lt.s32.totalorder %v383, 15
        %v396 = vsel %vm393, 1, 0
        %v397 = vsel %vm394, 1, 0
        %v398 = vsel %vm395, 1, 0
        %v399 = vcvt.s32.f32 %v396
        %v400 = vcvt.s32.f32 %v397
        %v401 = vcvt.s32.f32 %v398
        %v402 = vld [vmem:[#allocation4] sm:$0x7]
        %v404 = vlaneseq
        %v405 = vshrl.u32 %v404, 7
        %v406 = vsub.s32 0, %v405
        %v407 = vrot.slane %v402, %v406
        %v408 = vlaneseq
        %v409 = vshrl.u32 %v408, 7
        %v410 = vsub.s32 1, %v409
        %v411 = vrot.slane %v402, %v410
        %v412 = vlaneseq
        %v413 = vshrl.u32 %v412, 7
        %v414 = vsub.s32 2, %v413
        %v415 = vrot.slane %v402, %v414
        %419 = vst [vmem:[#allocation2] sm:$0xff] 0.0
        %vm420 = vcmask 1048064
        %421 = vst.msk [vmem:[#allocation2 + $0x18] sm:$0xff] %vm420, 0.0
        %vm422 = vcmask 523264
        %423 = vst.msk [vmem:[#allocation2 + $0x20] sm:$0xff] %vm422, 0.0
        %424 = vst [vmem:[#allocation3] sm:$0xff] 0.0
        %425 = vst.msk [vmem:[#allocation3 + $0x18] sm:$0xff] %vm420, 0.0
        %426 = vst.msk [vmem:[#allocation3 + $0x20] sm:$0xff] %vm422, 0.0
        %v427 = vld [vmem:[%s298] sm:$0xff]
        %v428 = vld [vmem:[%s298 + $0x8] sm:$0xf]
        %v429 = vunpack.c.l.bf16 %v427
        %v430 = vunpack.c.h.bf16 %v427
        %v431 = vunpack.c.l.bf16 %v428
        %432 = vst [vmem:[#allocation3 + $0x8] sm:$0xff] %v429
        %433 = vst [vmem:[#allocation3 + $0x10] sm:$0xff] %v430
        %434 = vst.msk [vmem:[#allocation3 + $0x18] sm:$0xff] %vm422, %v431
        %v435 = vld [vmem:[#allocation3] sm:$0xff]
        %v436 = vld [vmem:[#allocation3 + $0x8] sm:$0xff]
        %v437 = vld [vmem:[#allocation3 + $0x10] sm:$0xff]
        %v438 = vld [vmem:[#allocation3 + $0x18] sm:$0xff]
        %442 = vrot.lane.b32.xlu0 %v390, 111
        %v443 = vpop.permute.xlu0 %442
        %444 = vrot.lane.b32.xlu0 %v391, 111
        %v445 = vpop.permute.xlu0 %444
        %446 = vrot.lane.b32.xlu0 %v392, 111
        %v447 = vpop.permute.xlu0 %446
        %vm448 = vcmask 908288
        %v449 = vsel %vm448, %v443, %v445
        %v450 = vsel %vm448, %v445, %v447
        %v455 = vmul.f32 %v435, %v443
        %v456 = vmul.f32 %v436, %v449
        %v457 = vmul.f32 %v437, %v450
        %v458 = vmul.f32 %v438, %v447
        %462 = vrot.lane.b32.xlu0 %v399, 113
        %v463 = vpop.permute.xlu0 %462
        %464 = vrot.lane.b32.xlu0 %v400, 113
        %v465 = vpop.permute.xlu0 %464
        %466 = vrot.lane.b32.xlu0 %v401, 113
        %v467 = vpop.permute.xlu0 %466
        %vm468 = vcmask 924672
        %v469 = vsel %vm468, %v463, %v465
        %v470 = vsel %vm468, %v465, %v467
        %v475 = vmul.f32 %v435, %v463
        %v476 = vmul.f32 %v436, %v469
        %v477 = vmul.f32 %v437, %v470
        %v478 = vmul.f32 %v438, %v467
        %483 = vrot.lane.b32.xlu0 %v435, 127
        %v484 = vpop.permute.xlu0 %483
        %485 = vrot.lane.b32.xlu0 %v436, 127
        %v486 = vpop.permute.xlu0 %485
        %487 = vrot.lane.b32.xlu0 %v437, 127
        %v488 = vpop.permute.xlu0 %487
        %489 = vrot.lane.b32.xlu0 %v438, 127
        %v490 = vpop.permute.xlu0 %489
        %vm491 = vcmask 1039360
        %v492 = vsel %vm491, %v484, %v486
        %v493 = vsel %vm491, %v486, %v488
        %v494 = vsel %vm491, %v488, %v490
        %503 = vrot.lane.b32.xlu0 %v475, 126
        %v504 = vpop.permute.xlu0 %503
        %505 = vrot.lane.b32.xlu0 %v476, 126
        %v506 = vpop.permute.xlu0 %505
        %507 = vrot.lane.b32.xlu0 %v477, 126
        %v508 = vpop.permute.xlu0 %507
        %509 = vrot.lane.b32.xlu0 %v478, 126
        %v510 = vpop.permute.xlu0 %509
        %vm511 = vcmask 1031168
        %v512 = vsel %vm511, %v504, %v506
        %v513 = vsel %vm511, %v506, %v508
        %v514 = vsel %vm511, %v508, %v510
        %v519 = vpack.c.bf16 %v492, %v455
        %v520 = vpack.c.bf16 %v493, %v456
        %v521 = vpack.c.bf16 %v494, %v457
        %v522 = vpack.c.bf16 %v490, %v458
        %v523 = vpack.c.bf16 %v512, %v512
        %v524 = vpack.c.bf16 %v513, %v513
        %v525 = vpack.c.bf16 %v514, %v514
        %v526 = vpack.c.bf16 %v510, %v510
        %527 = vrot.lane.b32.xlu0 %v390, 127
        %v528 = vpop.permute.xlu0 %527
        %529 = vrot.lane.b32.xlu0 %v391, 127
        %v530 = vpop.permute.xlu0 %529
        %531 = vrot.lane.b32.xlu0 %v392, 127
        %v532 = vpop.permute.xlu0 %531
        %v533 = vsel %vm491, %v528, %v530
        %v534 = vsel %vm491, %v530, %v532
        %v539 = vmul.f32 %v435, %v528
        %v540 = vmul.f32 %v436, %v533
        %v541 = vmul.f32 %v437, %v534
        %v542 = vmul.f32 %v438, %v532
        %543 = vrot.lane.b32.xlu0 %v399, 1
        %v544 = vpop.permute.xlu0 %543
        %545 = vrot.lane.b32.xlu0 %v400, 1
        %v546 = vpop.permute.xlu0 %545
        %547 = vrot.lane.b32.xlu0 %v401, 1
        %v548 = vpop.permute.xlu0 %547
        %vm549 = vcmask 7168
        %v550 = vsel %vm549, %v544, %v546
        %v551 = vsel %vm549, %v546, %v548
        %v555 = vmul.f32 %v436, %v544
        %v556 = vmul.f32 %v437, %v550
        %v557 = vmul.f32 %v438, %v551
        %562 = vrot.lane.b32.xlu0 %v555, 126
        %v563 = vpop.permute.xlu0 %562
        %564 = vrot.lane.b32.xlu0 %v556, 126
        %v565 = vpop.permute.xlu0 %564
        %566 = vrot.lane.b32.xlu0 %v557, 126
        %v567 = vpop.permute.xlu0 %566
        %v568 = vsel %vm511, %v563, %v565
        %v569 = vsel %vm511, %v565, %v567
        %v574 = vpack.c.bf16 %v486, %v539
        %v575 = vpack.c.bf16 %v493, %v540
        %v576 = vpack.c.bf16 %v494, %v541
        %v577 = vpack.c.bf16 %v490, %v542
        %v578 = vpack.c.bf16 %v563, %v563
        %v579 = vpack.c.bf16 %v568, %v568
        %v580 = vpack.c.bf16 %v569, %v569
        %v581 = vpack.c.bf16 %v567, %v567
        %590 = vrot.lane.b32.xlu0 %v574, 1
        %v591 = vpop.permute.xlu0 %590
        %592 = vrot.lane.b32.xlu0 %v575, 1
        %v593 = vpop.permute.xlu0 %592
        %594 = vrot.lane.b32.xlu0 %v576, 1
        %v595 = vpop.permute.xlu0 %594
        %596 = vrot.lane.b32.xlu0 %v577, 1
        %v597 = vpop.permute.xlu0 %596
        %598 = vrot.lane.b32.xlu0 %v578, 1
        %v599 = vpop.permute.xlu0 %598
        %600 = vrot.lane.b32.xlu0 %v579, 1
        %v601 = vpop.permute.xlu0 %600
        %602 = vrot.lane.b32.xlu0 %v580, 1
        %v603 = vpop.permute.xlu0 %602
        %604 = vrot.lane.b32.xlu0 %v581, 1
        %v605 = vpop.permute.xlu0 %604
        %vm606 = vcmask 7168
        %v607 = vsel %vm606, %v591, %v593
        %v608 = vsel %vm606, %v593, %v595
        %v609 = vsel %vm606, %v595, %v597
        %v610 = vsel %vm606, %v599, %v601
        %v611 = vsel %vm606, %v601, %v603
        %v612 = vsel %vm606, %v603, %v605
        %vm616 = vcmask 195584
        %v618 = vsel %vm616, %v342, 0
        %vm620 = vcmask 1043456
        %v622 = vsel %vm620, %v610, 0
        %v625 = vsel %vm620, %v611, 0
        %v628 = vsel %vm620, %v612, 0
        %630 = vmatprep.subr.bf16.mxu0 %v608
        %631 = vmatpush1.bf16.msra.mxu0 %v607
        %632 = vmatprep.subr.bf16.mxu0 %v625
        %633 = vmatpush1.bf16.msra.mxu0 %v622
        %634 = vmatprep.subr.bf16.mxu0 0
        %635 = vmatpush1.bf16.msra.mxu0 0
        %636 = vmatprep.subr.bf16.mxu0 0
        %637 = vmatpush1.bf16.msra.mxu0 0
        %638 = vmatprep.subr.bf16.mxu0 0
        %639 = vmatpush1.bf16.msra.mxu0 0
        %640 = vmatprep.subr.bf16.mxu0 0
        %641 = vmatpush1.bf16.msra.mxu0 0
        %642 = vmatprep.subr.bf16.mxu0 0
        %643 = vmatpush1.bf16.msra.mxu0 0
        %644 = vmatprep.subr.bf16.mxu0 0
        %645 = vmatpush1.bf16.msra.mxu0 0
        %646 = vmatprep.subr.bf16.mxu0 0
        %647 = vmatpush1.bf16.msra.mxu0 0
        %648 = vmatprep.subr.bf16.mxu0 0
        %649 = vmatpush1.bf16.msra.mxu0 0
        %650 = vmatprep.subr.bf16.mxu0 0
        %651 = vmatpush1.bf16.msra.mxu0 0
        %652 = vmatprep.subr.bf16.mxu0 0
        %653 = vmatpush1.bf16.msra.mxu0 0
        %654 = vmatprep.subr.bf16.mxu0 0
        %655 = vmatpush1.bf16.msra.mxu0 0
        %656 = vmatprep.subr.bf16.mxu0 0
        %657 = vmatpush1.bf16.msra.mxu0 0
        %658 = vmatprep.subr.bf16.mxu0 0
        %659 = vmatpush1.bf16.msra.mxu0 0
        %660 = vmatprep.subr.bf16.mxu0 0
        %661 = vmatpush1.bf16.msra.mxu0 0
        %662 = vmatprep.mubr.bf16.mxu0 0
        %663 = vmatmul.mubr.bf16.gmra.mrb[0].mxu0 %v618
        %v664 = vpop.f32.mrb[0].mxu0
        %v665 = vadd.f32 0.0, %v664
        %v666 = vpop.f32.mrb[0].mxu0
        %v667 = vadd.f32 0.0, %v666
        %v668 = vpop.f32.mrb[0].mxu0
        %v669 = vpop.f32.mrb[0].mxu0
        %670 = vdwg.mxu0
        %671 = vmatprep.subr.bf16.mxu0 0
        %672 = vmatpush1.bf16.msra.mxu0 %v609
        %673 = vmatprep.subr.bf16.mxu0 0
        %674 = vmatpush1.bf16.msra.mxu0 %v628
        %675 = vmatprep.subr.bf16.mxu0 0
        %676 = vmatpush1.bf16.msra.mxu0 0
        %677 = vmatprep.subr.bf16.mxu0 0
        %678 = vmatpush1.bf16.msra.mxu0 0
        %679 = vmatprep.subr.bf16.mxu0 0
        %680 = vmatpush1.bf16.msra.mxu0 0
        %681 = vmatprep.subr.bf16.mxu0 0
        %682 = vmatpush1.bf16.msra.mxu0 0
        %683 = vmatprep.subr.bf16.mxu0 0
        %684 = vmatpush1.bf16.msra.mxu0 0
        %685 = vmatprep.subr.bf16.mxu0 0
        %686 = vmatpush1.bf16.msra.mxu0 0
        %687 = vmatprep.subr.bf16.mxu0 0
        %688 = vmatpush1.bf16.msra.mxu0 0
        %689 = vmatprep.subr.bf16.mxu0 0
        %690 = vmatpush1.bf16.msra.mxu0 0
        %691 = vmatprep.subr.bf16.mxu0 0
        %692 = vmatpush1.bf16.msra.mxu0 0
        %693 = vmatprep.subr.bf16.mxu0 0
        %694 = vmatpush1.bf16.msra.mxu0 0
        %695 = vmatprep.subr.bf16.mxu0 0
        %696 = vmatpush1.bf16.msra.mxu0 0
        %697 = vmatprep.subr.bf16.mxu0 0
        %698 = vmatpush1.bf16.msra.mxu0 0
        %699 = vmatprep.subr.bf16.mxu0 0
        %700 = vmatpush1.bf16.msra.mxu0 0
        %701 = vmatprep.subr.bf16.mxu0 0
        %702 = vmatpush1.bf16.msra.mxu0 0
        %703 = vmatprep.mubr.bf16.mxu0 0
        %704 = vmatmul.mubr.bf16.gmra.mrb[0].mxu0 %v618
        %v705 = vpop.f32.mrb[0].mxu0
        %v706 = vadd.f32 0.0, %v705
        %v707 = vpop.f32.mrb[0].mxu0
        %v708 = vpop.f32.mrb[0].mxu0
        %v709 = vpop.f32.mrb[0].mxu0
        %710 = vdwg.mxu0
        %719 = vrot.lane.b32.xlu0 %v519, 17
        %v720 = vpop.permute.xlu0 %719
        %721 = vrot.lane.b32.xlu0 %v520, 17
        %v722 = vpop.permute.xlu0 %721
        %723 = vrot.lane.b32.xlu0 %v521, 17
        %v724 = vpop.permute.xlu0 %723
        %725 = vrot.lane.b32.xlu0 %v522, 17
        %v726 = vpop.permute.xlu0 %725
        %727 = vrot.lane.b32.xlu0 %v523, 17
        %v728 = vpop.permute.xlu0 %727
        %729 = vrot.lane.b32.xlu0 %v524, 17
        %v730 = vpop.permute.xlu0 %729
        %731 = vrot.lane.b32.xlu0 %v525, 17
        %v732 = vpop.permute.xlu0 %731
        %733 = vrot.lane.b32.xlu0 %v526, 17
        %v734 = vpop.permute.xlu0 %733
        %vm735 = vcmask 138240
        %v736 = vsel %vm735, %v720, %v722
        %v737 = vsel %vm735, %v722, %v724
        %v738 = vsel %vm735, %v724, %v726
        %v739 = vsel %vm735, %v728, %v730
        %v740 = vsel %vm735, %v730, %v732
        %v741 = vsel %vm735, %v732, %v734
        %v746 = vsel %vm616, %v341, 0
        %v749 = vsel %vm620, %v739, 0
        %v752 = vsel %vm620, %v740, 0
        %v755 = vsel %vm620, %v741, 0
        %757 = vmatprep.subr.bf16.mxu0 %v737
        %758 = vmatpush1.bf16.msra.mxu0 %v736
        %759 = vmatprep.subr.bf16.mxu0 %v752
        %760 = vmatpush1.bf16.msra.mxu0 %v749
        %761 = vmatprep.subr.bf16.mxu0 0
        %762 = vmatpush1.bf16.msra.mxu0 0
        %763 = vmatprep.subr.bf16.mxu0 0
        %764 = vmatpush1.bf16.msra.mxu0 0
        %765 = vmatprep.subr.bf16.mxu0 0
        %766 = vmatpush1.bf16.msra.mxu0 0
        %767 = vmatprep.subr.bf16.mxu0 0
        %768 = vmatpush1.bf16.msra.mxu0 0
        %769 = vmatprep.subr.bf16.mxu0 0
        %770 = vmatpush1.bf16.msra.mxu0 0
        %771 = vmatprep.subr.bf16.mxu0 0
        %772 = vmatpush1.bf16.msra.mxu0 0
        %773 = vmatprep.subr.bf16.mxu0 0
        %774 = vmatpush1.bf16.msra.mxu0 0
        %775 = vmatprep.subr.bf16.mxu0 0
        %776 = vmatpush1.bf16.msra.mxu0 0
        %777 = vmatprep.subr.bf16.mxu0 0
        %778 = vmatpush1.bf16.msra.mxu0 0
        %779 = vmatprep.subr.bf16.mxu0 0
        %780 = vmatpush1.bf16.msra.mxu0 0
        %781 = vmatprep.subr.bf16.mxu0 0
        %782 = vmatpush1.bf16.msra.mxu0 0
        %783 = vmatprep.subr.bf16.mxu0 0
        %784 = vmatpush1.bf16.msra.mxu0 0
        %785 = vmatprep.subr.bf16.mxu0 0
        %786 = vmatpush1.bf16.msra.mxu0 0
        %787 = vmatprep.subr.bf16.mxu0 0
        %788 = vmatpush1.bf16.msra.mxu0 0
        %789 = vmatprep.mubr.bf16.mxu0 0
        %790 = vmatmul.mubr.bf16.gmra.mrb[0].mxu0 %v746
        %v791 = vpop.f32.mrb[0].mxu0
        %v792 = vadd.f32 %v665, %v791
        %v793 = vpop.f32.mrb[0].mxu0
        %v794 = vadd.f32 %v667, %v793
        %v795 = vpop.f32.mrb[0].mxu0
        %v796 = vpop.f32.mrb[0].mxu0
        %797 = vdwg.mxu0
        %798 = vmatprep.subr.bf16.mxu0 0
        %799 = vmatpush1.bf16.msra.mxu0 %v738
        %800 = vmatprep.subr.bf16.mxu0 0
        %801 = vmatpush1.bf16.msra.mxu0 %v755
        %802 = vmatprep.subr.bf16.mxu0 0
        %803 = vmatpush1.bf16.msra.mxu0 0
        %804 = vmatprep.subr.bf16.mxu0 0
        %805 = vmatpush1.bf16.msra.mxu0 0
        %806 = vmatprep.subr.bf16.mxu0 0
        %807 = vmatpush1.bf16.msra.mxu0 0
        %808 = vmatprep.subr.bf16.mxu0 0
        %809 = vmatpush1.bf16.msra.mxu0 0
        %810 = vmatprep.subr.bf16.mxu0 0
        %811 = vmatpush1.bf16.msra.mxu0 0
        %812 = vmatprep.subr.bf16.mxu0 0
        %813 = vmatpush1.bf16.msra.mxu0 0
        %814 = vmatprep.subr.bf16.mxu0 0
        %815 = vmatpush1.bf16.msra.mxu0 0
        %816 = vmatprep.subr.bf16.mxu0 0
        %817 = vmatpush1.bf16.msra.mxu0 0
        %818 = vmatprep.subr.bf16.mxu0 0
        %819 = vmatpush1.bf16.msra.mxu0 0
        %820 = vmatprep.subr.bf16.mxu0 0
        %821 = vmatpush1.bf16.msra.mxu0 0
        %822 = vmatprep.subr.bf16.mxu0 0
        %823 = vmatpush1.bf16.msra.mxu0 0
        %824 = vmatprep.subr.bf16.mxu0 0
        %825 = vmatpush1.bf16.msra.mxu0 0
        %826 = vmatprep.subr.bf16.mxu0 0
        %827 = vmatpush1.bf16.msra.mxu0 0
        %828 = vmatprep.subr.bf16.mxu0 0
        %829 = vmatpush1.bf16.msra.mxu0 0
        %830 = vmatprep.mubr.bf16.mxu0 0
        %831 = vmatmul.mubr.bf16.gmra.mrb[0].mxu0 %v746
        %v832 = vpop.f32.mrb[0].mxu0
        %v833 = vadd.f32 %v706, %v832
        %v834 = vpop.f32.mrb[0].mxu0
        %v835 = vpop.f32.mrb[0].mxu0
        %v836 = vpop.f32.mrb[0].mxu0
        %837 = vdwg.mxu0
        %838 = vrot.lane.b32.xlu0 %v390, 15
        %v839 = vpop.permute.xlu0 %838
        %840 = vrot.lane.b32.xlu0 %v391, 15
        %v841 = vpop.permute.xlu0 %840
        %842 = vrot.lane.b32.xlu0 %v392, 15
        %v843 = vpop.permute.xlu0 %842
        %vm844 = vcmask 121856
        %v845 = vsel %vm844, %v839, %v841
        %v846 = vsel %vm844, %v841, %v843
        %v850 = vmul.f32 %v436, %v839
        %v851 = vmul.f32 %v437, %v845
        %v852 = vmul.f32 %v438, %v846
        %853 = vrot.lane.b32.xlu0 %v399, 17
        %v854 = vpop.permute.xlu0 %853
        %855 = vrot.lane.b32.xlu0 %v400, 17
        %v856 = vpop.permute.xlu0 %855
        %857 = vrot.lane.b32.xlu0 %v401, 17
        %v858 = vpop.permute.xlu0 %857
        %vm859 = vcmask 138240
        %v860 = vsel %vm859, %v854, %v856
        %v861 = vsel %vm859, %v856, %v858
        %v865 = vmul.f32 %v436, %v854
        %v866 = vmul.f32 %v437, %v860
        %v867 = vmul.f32 %v438, %v861
        %871 = vrot.lane.b32.xlu0 %v865, 126
        %v872 = vpop.permute.xlu0 %871
        %873 = vrot.lane.b32.xlu0 %v866, 126
        %v874 = vpop.permute.xlu0 %873
        %875 = vrot.lane.b32.xlu0 %v867, 126
        %v876 = vpop.permute.xlu0 %875
        %v877 = vsel %vm511, %v872, %v874
        %v878 = vsel %vm511, %v874, %v876
        %v882 = vpack.c.bf16 %v493, %v850
        %v883 = vpack.c.bf16 %v494, %v851
        %v884 = vpack.c.bf16 %v490, %v852
        %v885 = vpack.c.bf16 %v877, %v877
        %v886 = vpack.c.bf16 %v878, %v878
        %v887 = vpack.c.bf16 %v876, %v876
        %894 = vrot.lane.b32.xlu0 %v882, 113
        %v895 = vpop.permute.xlu0 %894
        %896 = vrot.lane.b32.xlu0 %v883, 113
        %v897 = vpop.permute.xlu0 %896
        %898 = vrot.lane.b32.xlu0 %v884, 113
        %v899 = vpop.permute.xlu0 %898
        %900 = vrot.lane.b32.xlu0 %v885, 113
        %v901 = vpop.permute.xlu0 %900
        %902 = vrot.lane.b32.xlu0 %v886, 113
        %v903 = vpop.permute.xlu0 %902
        %904 = vrot.lane.b32.xlu0 %v887, 113
        %v905 = vpop.permute.xlu0 %904
        %vm906 = vcmask 924672
        %v907 = vsel %vm906, %v895, %v897
        %v908 = vsel %vm906, %v897, %v899
        %v909 = vsel %vm906, %v901, %v903
        %v910 = vsel %vm906, %v903, %v905
        %v915 = vsel %vm616, %v343, 0
        %v918 = vsel %vm620, %v909, 0
        %v921 = vsel %vm620, %v910, 0
        %v924 = vsel %vm620, %v905, 0
        %926 = vmatprep.subr.bf16.mxu0 %v908
        %927 = vmatpush1.bf16.msra.mxu0 %v907
        %928 = vmatprep.subr.bf16.mxu0 %v921
        %929 = vmatpush1.bf16.msra.mxu0 %v918
        %930 = vmatprep.subr.bf16.mxu0 0
        %931 = vmatpush1.bf16.msra.mxu0 0
        %932 = vmatprep.subr.bf16.mxu0 0
        %933 = vmatpush1.bf16.msra.mxu0 0
        %934 = vmatprep.subr.bf16.mxu0 0
        %935 = vmatpush1.bf16.msra.mxu0 0
        %936 = vmatprep.subr.bf16.mxu0 0
        %937 = vmatpush1.bf16.msra.mxu0 0
        %938 = vmatprep.subr.bf16.mxu0 0
        %939 = vmatpush1.bf16.msra.mxu0 0
        %940 = vmatprep.subr.bf16.mxu0 0
        %941 = vmatpush1.bf16.msra.mxu0 0
        %942 = vmatprep.subr.bf16.mxu0 0
        %943 = vmatpush1.bf16.msra.mxu0 0
        %944 = vmatprep.subr.bf16.mxu0 0
        %945 = vmatpush1.bf16.msra.mxu0 0
        %946 = vmatprep.subr.bf16.mxu0 0
        %947 = vmatpush1.bf16.msra.mxu0 0
        %948 = vmatprep.subr.bf16.mxu0 0
        %949 = vmatpush1.bf16.msra.mxu0 0
        %950 = vmatprep.subr.bf16.mxu0 0
        %951 = vmatpush1.bf16.msra.mxu0 0
        %952 = vmatprep.subr.bf16.mxu0 0
        %953 = vmatpush1.bf16.msra.mxu0 0
        %954 = vmatprep.subr.bf16.mxu0 0
        %955 = vmatpush1.bf16.msra.mxu0 0
        %956 = vmatprep.subr.bf16.mxu0 0
        %957 = vmatpush1.bf16.msra.mxu0 0
        %958 = vmatprep.mubr.bf16.mxu0 0
        %959 = vmatmul.mubr.bf16.gmra.mrb[0].mxu0 %v915
        %v960 = vpop.f32.mrb[0].mxu0
        %v961 = vadd.f32 0.0, %v960
        %v962 = vpop.f32.mrb[0].mxu0
        %v963 = vadd.f32 0.0, %v962
        %v964 = vpop.f32.mrb[0].mxu0
        %v965 = vpop.f32.mrb[0].mxu0
        %966 = vdwg.mxu0
        %967 = vmatprep.subr.bf16.mxu0 0
        %968 = vmatpush1.bf16.msra.mxu0 %v899
        %969 = vmatprep.subr.bf16.mxu0 0
        %970 = vmatpush1.bf16.msra.mxu0 %v924
        %971 = vmatprep.subr.bf16.mxu0 0
        %972 = vmatpush1.bf16.msra.mxu0 0
        %973 = vmatprep.subr.bf16.mxu0 0
        %974 = vmatpush1.bf16.msra.mxu0 0
        %975 = vmatprep.subr.bf16.mxu0 0
        %976 = vmatpush1.bf16.msra.mxu0 0
        %977 = vmatprep.subr.bf16.mxu0 0
        %978 = vmatpush1.bf16.msra.mxu0 0
        %979 = vmatprep.subr.bf16.mxu0 0
        %980 = vmatpush1.bf16.msra.mxu0 0
        %981 = vmatprep.subr.bf16.mxu0 0
        %982 = vmatpush1.bf16.msra.mxu0 0
        %983 = vmatprep.subr.bf16.mxu0 0
        %984 = vmatpush1.bf16.msra.mxu0 0
        %985 = vmatprep.subr.bf16.mxu0 0
        %986 = vmatpush1.bf16.msra.mxu0 0
        %987 = vmatprep.subr.bf16.mxu0 0
        %988 = vmatpush1.bf16.msra.mxu0 0
        %989 = vmatprep.subr.bf16.mxu0 0
        %990 = vmatpush1.bf16.msra.mxu0 0
        %991 = vmatprep.subr.bf16.mxu0 0
        %992 = vmatpush1.bf16.msra.mxu0 0
        %993 = vmatprep.subr.bf16.mxu0 0
        %994 = vmatpush1.bf16.msra.mxu0 0
        %995 = vmatprep.subr.bf16.mxu0 0
        %996 = vmatpush1.bf16.msra.mxu0 0
        %997 = vmatprep.subr.bf16.mxu0 0
        %998 = vmatpush1.bf16.msra.mxu0 0
        %999 = vmatprep.mubr.bf16.mxu0 0
        %1000 = vmatmul.mubr.bf16.gmra.mrb[0].mxu0 %v915
        %v1001 = vpop.f32.mrb[0].mxu0
        %v1002 = vadd.f32 0.0, %v1001
        %v1003 = vpop.f32.mrb[0].mxu0
        %v1004 = vpop.f32.mrb[0].mxu0
        %v1005 = vpop.f32.mrb[0].mxu0
        %1006 = vdwg.mxu0
        %v1007 = vadd.f32 %v792, %v961
        %v1008 = vadd.f32 %v794, %v963
        %v1009 = vadd.f32 %v833, %v1002
        %v1010 = vrot.slane %v335, 4
        %v1011 = vmax.f32 %v335, %v1010
        %v1012 = vrot.slane %v1011, 2
        %v1013 = vmax.f32 %v1011, %v1012
        %v1014 = vrot.slane %v1013, 1
        %v1015 = vmax.f32 %v1013, %v1014
        %v1016 = vrot.slane %v336, 4
        %v1017 = vmax.f32 %v336, %v1016
        %v1018 = vrot.slane %v1017, 2
        %v1019 = vmax.f32 %v1017, %v1018
        %v1020 = vrot.slane %v1019, 1
        %v1021 = vmax.f32 %v1019, %v1020
        %v1022 = vsel %vm422, %v337, -inf
        %v1023 = vrot.slane %v1022, 4
        %v1024 = vmax.f32 %v1022, %v1023
        %v1025 = vrot.slane %v1024, 2
        %v1026 = vmax.f32 %v1024, %v1025
        %v1027 = vrot.slane %v1026, 1
        %v1028 = vmax.f32 %v1026, %v1027
        %v1029 = vsub.f32 %v335, %v1015
        %v1030 = vsub.f32 %v336, %v1021
        %v1031 = vsub.f32 %v337, %v1028
        %v1032 = vmul.f32 %v1029, 1.442695
        %v1033 = vpow.pop %v1032
        %v1034 = vmul.f32 %v1030, 1.442695
        %v1035 = vpow.pop %v1034
        %v1036 = vmul.f32 %v1031, 1.442695
        %v1037 = vpow.pop %v1036
        %v1038 = vrot.slane %v1033, 4
        %v1039 = vadd.f32 %v1033, %v1038
        %v1040 = vrot.slane %v1039, 2
        %v1041 = vadd.f32 %v1039, %v1040
        %v1042 = vrot.slane %v1041, 1
        %v1043 = vadd.f32 %v1041, %v1042
        %v1044 = vrot.slane %v1035, 4
        %v1045 = vadd.f32 %v1035, %v1044
        %v1046 = vrot.slane %v1045, 2
        %v1047 = vadd.f32 %v1045, %v1046
        %v1048 = vrot.slane %v1047, 1
        %v1049 = vadd.f32 %v1047, %v1048
        %v1050 = vsel %vm422, %v1037, 0.0
        %v1051 = vrot.slane %v1050, 4
        %v1052 = vadd.f32 %v1050, %v1051
        %v1053 = vrot.slane %v1052, 2
        %v1054 = vadd.f32 %v1052, %v1053
        %v1055 = vrot.slane %v1054, 1
        %v1056 = vadd.f32 %v1054, %v1055
        %v1057 = vrcp.pop %v1043
        %v1058 = vmul.f32 %v1033, %v1057
        %v1059 = vrcp.pop %v1049
        %v1060 = vmul.f32 %v1035, %v1059
        %v1061 = vrcp.pop %v1056
        %v1062 = vmul.f32 %v1037, %v1061
        %v1063 = vmul.f32 %v1058, %v407
        %v1064 = vmul.f32 %v1060, %v411
        %v1065 = vmul.f32 %v1062, %v415
        %1066 = vst [vmem:[#allocation2 + $0x8] sm:$0xff] %v1063
        %1067 = vst [vmem:[#allocation2 + $0x10] sm:$0xff] %v1064
        %1068 = vst.msk [vmem:[#allocation2 + $0x18] sm:$0xff] %vm422, %v1065
        %v1069 = vld [vmem:[#allocation2] sm:$0xff]
        %v1070 = vld [vmem:[#allocation2 + $0x8] sm:$0xff]
        %v1071 = vld [vmem:[#allocation2 + $0x10] sm:$0xff]
        %v1072 = vld [vmem:[#allocation2 + $0x18] sm:$0xff]
        %v1073 = vmul.f32 %v1069, %v443
        %v1074 = vmul.f32 %v1070, %v449
        %v1075 = vmul.f32 %v1071, %v450
        %v1076 = vmul.f32 %v1072, %v447
        %v1077 = vmul.f32 %v1069, %v463
        %v1078 = vmul.f32 %v1070, %v469
        %v1079 = vmul.f32 %v1071, %v470
        %v1080 = vmul.f32 %v1072, %v467
        %1085 = vrot.lane.b32.xlu0 %v1069, 127
        %v1086 = vpop.permute.xlu0 %1085
        %1087 = vrot.lane.b32.xlu0 %v1070, 127
        %v1088 = vpop.permute.xlu0 %1087
        %1089 = vrot.lane.b32.xlu0 %v1071, 127
        %v1090 = vpop.permute.xlu0 %1089
        %1091 = vrot.lane.b32.xlu0 %v1072, 127
        %v1092 = vpop.permute.xlu0 %1091
        %v1093 = vsel %vm491, %v1086, %v1088
        %v1094 = vsel %vm491, %v1088, %v1090
        %v1095 = vsel %vm491, %v1090, %v1092
        %1104 = vrot.lane.b32.xlu0 %v1077, 126
        %v1105 = vpop.permute.xlu0 %1104
        %1106 = vrot.lane.b32.xlu0 %v1078, 126
        %v1107 = vpop.permute.xlu0 %1106
        %1108 = vrot.lane.b32.xlu0 %v1079, 126
        %v1109 = vpop.permute.xlu0 %1108
        %1110 = vrot.lane.b32.xlu0 %v1080, 126
        %v1111 = vpop.permute.xlu0 %1110
        %v1112 = vsel %vm511, %v1105, %v1107
        %v1113 = vsel %vm511, %v1107, %v1109
        %v1114 = vsel %vm511, %v1109, %v1111
        %v1119 = vpack.c.bf16 %v1093, %v1073
        %v1120 = vpack.c.bf16 %v1094, %v1074
        %v1121 = vpack.c.bf16 %v1095, %v1075
        %v1122 = vpack.c.bf16 %v1092, %v1076
        %v1123 = vpack.c.bf16 %v1112, %v1112
        %v1124 = vpack.c.bf16 %v1113, %v1113
        %v1125 = vpack.c.bf16 %v1114, %v1114
        %v1126 = vpack.c.bf16 %v1111, %v1111
        %1135 = vrot.lane.b32.xlu0 %v1119, 17
        %v1136 = vpop.permute.xlu0 %1135
        %1137 = vrot.lane.b32.xlu0 %v1120, 17
        %v1138 = vpop.permute.xlu0 %1137
        %1139 = vrot.lane.b32.xlu0 %v1121, 17
        %v1140 = vpop.permute.xlu0 %1139
        %1141 = vrot.lane.b32.xlu0 %v1122, 17
        %v1142 = vpop.permute.xlu0 %1141
        %1143 = vrot.lane.b32.xlu0 %v1123, 17
        %v1144 = vpop.permute.xlu0 %1143
        %1145 = vrot.lane.b32.xlu0 %v1124, 17
        %v1146 = vpop.permute.xlu0 %1145
        %1147 = vrot.lane.b32.xlu0 %v1125, 17
        %v1148 = vpop.permute.xlu0 %1147
        %1149 = vrot.lane.b32.xlu0 %v1126, 17
        %v1150 = vpop.permute.xlu0 %1149
        %v1151 = vsel %vm735, %v1136, %v1138
        %v1152 = vsel %vm735, %v1138, %v1140
        %v1153 = vsel %vm735, %v1140, %v1142
        %v1154 = vsel %vm735, %v1144, %v1146
        %v1155 = vsel %vm735, %v1146, %v1148
        %v1156 = vsel %vm735, %v1148, %v1150
        %v1161 = vsel %vm616, %v338, 0
        %v1164 = vsel %vm620, %v1154, 0
        %v1167 = vsel %vm620, %v1155, 0
        %v1170 = vsel %vm620, %v1156, 0
        %1172 = vmatprep.subr.bf16.mxu0 %v1152
        %1173 = vmatpush1.bf16.msra.mxu0 %v1151
        %1174 = vmatprep.subr.bf16.mxu0 %v1167
        %1175 = vmatpush1.bf16.msra.mxu0 %v1164
        %1176 = vmatprep.subr.bf16.mxu0 0
        %1177 = vmatpush1.bf16.msra.mxu0 0
        %1178 = vmatprep.subr.bf16.mxu0 0
        %1179 = vmatpush1.bf16.msra.mxu0 0
        %1180 = vmatprep.subr.bf16.mxu0 0
        %1181 = vmatpush1.bf16.msra.mxu0 0
        %1182 = vmatprep.subr.bf16.mxu0 0
        %1183 = vmatpush1.bf16.msra.mxu0 0
        %1184 = vmatprep.subr.bf16.mxu0 0
        %1185 = vmatpush1.bf16.msra.mxu0 0
        %1186 = vmatprep.subr.bf16.mxu0 0
        %1187 = vmatpush1.bf16.msra.mxu0 0
        %1188 = vmatprep.subr.bf16.mxu0 0
        %1189 = vmatpush1.bf16.msra.mxu0 0
        %1190 = vmatprep.subr.bf16.mxu0 0
        %1191 = vmatpush1.bf16.msra.mxu0 0
        %1192 = vmatprep.subr.bf16.mxu0 0
        %1193 = vmatpush1.bf16.msra.mxu0 0
        %1194 = vmatprep.subr.bf16.mxu0 0
        %1195 = vmatpush1.bf16.msra.mxu0 0
        %1196 = vmatprep.subr.bf16.mxu0 0
        %1197 = vmatpush1.bf16.msra.mxu0 0
        %1198 = vmatprep.subr.bf16.mxu0 0
        %1199 = vmatpush1.bf16.msra.mxu0 0
        %1200 = vmatprep.subr.bf16.mxu0 0
        %1201 = vmatpush1.bf16.msra.mxu0 0
        %1202 = vmatprep.subr.bf16.mxu0 0
        %1203 = vmatpush1.bf16.msra.mxu0 0
        %1204 = vmatprep.mubr.bf16.mxu0 0
        %1205 = vmatmul.mubr.bf16.gmra.mrb[0].mxu0 %v1161
        %v1206 = vpop.f32.mrb[0].mxu0
        %v1207 = vadd.f32 0.0, %v1206
        %v1208 = vpop.f32.mrb[0].mxu0
        %v1209 = vadd.f32 0.0, %v1208
        %v1210 = vpop.f32.mrb[0].mxu0
        %v1211 = vpop.f32.mrb[0].mxu0
        %1212 = vdwg.mxu0
        %1213 = vmatprep.subr.bf16.mxu0 0
        %1214 = vmatpush1.bf16.msra.mxu0 %v1153
        %1215 = vmatprep.subr.bf16.mxu0 0
        %1216 = vmatpush1.bf16.msra.mxu0 %v1170
        %1217 = vmatprep.subr.bf16.mxu0 0
        %1218 = vmatpush1.bf16.msra.mxu0 0
        %1219 = vmatprep.subr.bf16.mxu0 0
        %1220 = vmatpush1.bf16.msra.mxu0 0
        %1221 = vmatprep.subr.bf16.mxu0 0
        %1222 = vmatpush1.bf16.msra.mxu0 0
        %1223 = vmatprep.subr.bf16.mxu0 0
        %1224 = vmatpush1.bf16.msra.mxu0 0
        %1225 = vmatprep.subr.bf16.mxu0 0
        %1226 = vmatpush1.bf16.msra.mxu0 0
        %1227 = vmatprep.subr.bf16.mxu0 0
        %1228 = vmatpush1.bf16.msra.mxu0 0
        %1229 = vmatprep.subr.bf16.mxu0 0
        %1230 = vmatpush1.bf16.msra.mxu0 0
        %1231 = vmatprep.subr.bf16.mxu0 0
        %1232 = vmatpush1.bf16.msra.mxu0 0
        %1233 = vmatprep.subr.bf16.mxu0 0
        %1234 = vmatpush1.bf16.msra.mxu0 0
        %1235 = vmatprep.subr.bf16.mxu0 0
        %1236 = vmatpush1.bf16.msra.mxu0 0
        %1237 = vmatprep.subr.bf16.mxu0 0
        %1238 = vmatpush1.bf16.msra.mxu0 0
        %1239 = vmatprep.subr.bf16.mxu0 0
        %1240 = vmatpush1.bf16.msra.mxu0 0
        %1241 = vmatprep.subr.bf16.mxu0 0
        %1242 = vmatpush1.bf16.msra.mxu0 0
        %1243 = vmatprep.subr.bf16.mxu0 0
        %1244 = vmatpush1.bf16.msra.mxu0 0
        %1245 = vmatprep.mubr.bf16.mxu0 0
        %1246 = vmatmul.mubr.bf16.gmra.mrb[0].mxu0 %v1161
        %v1247 = vpop.f32.mrb[0].mxu0
        %v1248 = vadd.f32 0.0, %v1247
        %v1249 = vpop.f32.mrb[0].mxu0
        %v1250 = vpop.f32.mrb[0].mxu0
        %v1251 = vpop.f32.mrb[0].mxu0
        %1252 = vdwg.mxu0
        %v1253 = vadd.f32 %v1007, %v1207
        %v1254 = vadd.f32 %v1008, %v1209
        %v1255 = vadd.f32 %v1009, %v1248
        %v1256 = vmul.f32 %v1069, %v528
        %v1257 = vmul.f32 %v1070, %v533
        %v1258 = vmul.f32 %v1071, %v534
        %v1259 = vmul.f32 %v1072, %v532
        %v1260 = vmul.f32 %v1070, %v544
        %v1261 = vmul.f32 %v1071, %v550
        %v1262 = vmul.f32 %v1072, %v551
        %1267 = vrot.lane.b32.xlu0 %v1260, 126
        %v1268 = vpop.permute.xlu0 %1267
        %1269 = vrot.lane.b32.xlu0 %v1261, 126
        %v1270 = vpop.permute.xlu0 %1269
        %1271 = vrot.lane.b32.xlu0 %v1262, 126
        %v1272 = vpop.permute.xlu0 %1271
        %v1273 = vsel %vm511, %v1268, %v1270
        %v1274 = vsel %vm511, %v1270, %v1272
        %v1279 = vpack.c.bf16 %v1088, %v1256
        %v1280 = vpack.c.bf16 %v1094, %v1257
        %v1281 = vpack.c.bf16 %v1095, %v1258
        %v1282 = vpack.c.bf16 %v1092, %v1259
        %v1283 = vpack.c.bf16 %v1268, %v1268
        %v1284 = vpack.c.bf16 %v1273, %v1273
        %v1285 = vpack.c.bf16 %v1274, %v1274
        %v1286 = vpack.c.bf16 %v1272, %v1272
        %1295 = vrot.lane.b32.xlu0 %v1279, 1
        %v1296 = vpop.permute.xlu0 %1295
        %1297 = vrot.lane.b32.xlu0 %v1280, 1
        %v1298 = vpop.permute.xlu0 %1297
        %1299 = vrot.lane.b32.xlu0 %v1281, 1
        %v1300 = vpop.permute.xlu0 %1299
        %1301 = vrot.lane.b32.xlu0 %v1282, 1
        %v1302 = vpop.permute.xlu0 %1301
        %1303 = vrot.lane.b32.xlu0 %v1283, 1
        %v1304 = vpop.permute.xlu0 %1303
        %1305 = vrot.lane.b32.xlu0 %v1284, 1
        %v1306 = vpop.permute.xlu0 %1305
        %1307 = vrot.lane.b32.xlu0 %v1285, 1
        %v1308 = vpop.permute.xlu0 %1307
        %1309 = vrot.lane.b32.xlu0 %v1286, 1
        %v1310 = vpop.permute.xlu0 %1309
        %v1311 = vsel %vm606, %v1296, %v1298
        %v1312 = vsel %vm606, %v1298, %v1300
        %v1313 = vsel %vm606, %v1300, %v1302
        %v1314 = vsel %vm606, %v1304, %v1306
        %v1315 = vsel %vm606, %v1306, %v1308
        %v1316 = vsel %vm606, %v1308, %v1310
        %v1321 = vsel %vm616, %v339, 0
        %v1324 = vsel %vm620, %v1314, 0
        %v1327 = vsel %vm620, %v1315, 0
        %v1330 = vsel %vm620, %v1316, 0
        %1332 = vmatprep.subr.bf16.mxu0 %v1312
        %1333 = vmatpush1.bf16.msra.mxu0 %v1311
        %1334 = vmatprep.subr.bf16.mxu0 %v1327
        %1335 = vmatpush1.bf16.msra.mxu0 %v1324
        %1336 = vmatprep.subr.bf16.mxu0 0
        %1337 = vmatpush1.bf16.msra.mxu0 0
        %1338 = vmatprep.subr.bf16.mxu0 0
        %1339 = vmatpush1.bf16.msra.mxu0 0
        %1340 = vmatprep.subr.bf16.mxu0 0
        %1341 = vmatpush1.bf16.msra.mxu0 0
        %1342 = vmatprep.subr.bf16.mxu0 0
        %1343 = vmatpush1.bf16.msra.mxu0 0
        %1344 = vmatprep.subr.bf16.mxu0 0
        %1345 = vmatpush1.bf16.msra.mxu0 0
        %1346 = vmatprep.subr.bf16.mxu0 0
        %1347 = vmatpush1.bf16.msra.mxu0 0
        %1348 = vmatprep.subr.bf16.mxu0 0
        %1349 = vmatpush1.bf16.msra.mxu0 0
        %1350 = vmatprep.subr.bf16.mxu0 0
        %1351 = vmatpush1.bf16.msra.mxu0 0
        %1352 = vmatprep.subr.bf16.mxu0 0
        %1353 = vmatpush1.bf16.msra.mxu0 0
        %1354 = vmatprep.subr.bf16.mxu0 0
        %1355 = vmatpush1.bf16.msra.mxu0 0
        %1356 = vmatprep.subr.bf16.mxu0 0
        %1357 = vmatpush1.bf16.msra.mxu0 0
        %1358 = vmatprep.subr.bf16.mxu0 0
        %1359 = vmatpush1.bf16.msra.mxu0 0
        %1360 = vmatprep.subr.bf16.mxu0 0
        %1361 = vmatpush1.bf16.msra.mxu0 0
        %1362 = vmatprep.subr.bf16.mxu0 0
        %1363 = vmatpush1.bf16.msra.mxu0 0
        %1364 = vmatprep.mubr.bf16.mxu0 0
        %1365 = vmatmul.mubr.bf16.gmra.mrb[0].mxu0 %v1321
        %v1366 = vpop.f32.mrb[0].mxu0
        %v1367 = vadd.f32 0.0, %v1366
        %v1368 = vpop.f32.mrb[0].mxu0
        %v1369 = vadd.f32 0.0, %v1368
        %v1370 = vpop.f32.mrb[0].mxu0
        %v1371 = vpop.f32.mrb[0].mxu0
        %1372 = vdwg.mxu0
        %1373 = vmatprep.subr.bf16.mxu0 0
        %1374 = vmatpush1.bf16.msra.mxu0 %v1313
        %1375 = vmatprep.subr.bf16.mxu0 0
        %1376 = vmatpush1.bf16.msra.mxu0 %v1330
        %1377 = vmatprep.subr.bf16.mxu0 0
        %1378 = vmatpush1.bf16.msra.mxu0 0
        %1379 = vmatprep.subr.bf16.mxu0 0
        %1380 = vmatpush1.bf16.msra.mxu0 0
        %1381 = vmatprep.subr.bf16.mxu0 0
        %1382 = vmatpush1.bf16.msra.mxu0 0
        %1383 = vmatprep.subr.bf16.mxu0 0
        %1384 = vmatpush1.bf16.msra.mxu0 0
        %1385 = vmatprep.subr.bf16.mxu0 0
        %1386 = vmatpush1.bf16.msra.mxu0 0
        %1387 = vmatprep.subr.bf16.mxu0 0
        %1388 = vmatpush1.bf16.msra.mxu0 0
        %1389 = vmatprep.subr.bf16.mxu0 0
        %1390 = vmatpush1.bf16.msra.mxu0 0
        %1391 = vmatprep.subr.bf16.mxu0 0
        %1392 = vmatpush1.bf16.msra.mxu0 0
        %1393 = vmatprep.subr.bf16.mxu0 0
        %1394 = vmatpush1.bf16.msra.mxu0 0
        %1395 = vmatprep.subr.bf16.mxu0 0
        %1396 = vmatpush1.bf16.msra.mxu0 0
        %1397 = vmatprep.subr.bf16.mxu0 0
        %1398 = vmatpush1.bf16.msra.mxu0 0
        %1399 = vmatprep.subr.bf16.mxu0 0
        %1400 = vmatpush1.bf16.msra.mxu0 0
        %1401 = vmatprep.subr.bf16.mxu0 0
        %1402 = vmatpush1.bf16.msra.mxu0 0
        %1403 = vmatprep.subr.bf16.mxu0 0
        %1404 = vmatpush1.bf16.msra.mxu0 0
        %1405 = vmatprep.mubr.bf16.mxu0 0
        %1406 = vmatmul.mubr.bf16.gmra.mrb[0].mxu0 %v1321
        %v1407 = vpop.f32.mrb[0].mxu0
        %v1408 = vadd.f32 0.0, %v1407
        %v1409 = vpop.f32.mrb[0].mxu0
        %v1410 = vpop.f32.mrb[0].mxu0
        %v1411 = vpop.f32.mrb[0].mxu0
        %1412 = vdwg.mxu0
        %v1413 = vadd.f32 %v1253, %v1367
        %v1414 = vadd.f32 %v1254, %v1369
        %v1415 = vadd.f32 %v1255, %v1408
        %v1416 = vmul.f32 %v1070, %v839
        %v1417 = vmul.f32 %v1071, %v845
        %v1418 = vmul.f32 %v1072, %v846
        %v1419 = vmul.f32 %v1070, %v854
        %v1420 = vmul.f32 %v1071, %v860
        %v1421 = vmul.f32 %v1072, %v861
        %1425 = vrot.lane.b32.xlu0 %v1419, 126
        %v1426 = vpop.permute.xlu0 %1425
        %1427 = vrot.lane.b32.xlu0 %v1420, 126
        %v1428 = vpop.permute.xlu0 %1427
        %1429 = vrot.lane.b32.xlu0 %v1421, 126
        %v1430 = vpop.permute.xlu0 %1429
        %v1431 = vsel %vm511, %v1426, %v1428
        %v1432 = vsel %vm511, %v1428, %v1430
        %v1436 = vpack.c.bf16 %v1094, %v1416
        %v1437 = vpack.c.bf16 %v1095, %v1417
        %v1438 = vpack.c.bf16 %v1092, %v1418
        %v1439 = vpack.c.bf16 %v1431, %v1431
        %v1440 = vpack.c.bf16 %v1432, %v1432
        %v1441 = vpack.c.bf16 %v1430, %v1430
        %1448 = vrot.lane.b32.xlu0 %v1436, 113
        %v1449 = vpop.permute.xlu0 %1448
        %1450 = vrot.lane.b32.xlu0 %v1437, 113
        %v1451 = vpop.permute.xlu0 %1450
        %1452 = vrot.lane.b32.xlu0 %v1438, 113
        %v1453 = vpop.permute.xlu0 %1452
        %1454 = vrot.lane.b32.xlu0 %v1439, 113
        %v1455 = vpop.permute.xlu0 %1454
        %1456 = vrot.lane.b32.xlu0 %v1440, 113
        %v1457 = vpop.permute.xlu0 %1456
        %1458 = vrot.lane.b32.xlu0 %v1441, 113
        %v1459 = vpop.permute.xlu0 %1458
        %v1460 = vsel %vm906, %v1449, %v1451
        %v1461 = vsel %vm906, %v1451, %v1453
        %v1462 = vsel %vm906, %v1455, %v1457
        %v1463 = vsel %vm906, %v1457, %v1459
        %v1468 = vsel %vm616, %v340, 0
        %v1471 = vsel %vm620, %v1462, 0
        %v1474 = vsel %vm620, %v1463, 0
        %v1477 = vsel %vm620, %v1459, 0
        %1479 = vmatprep.subr.bf16.mxu0 %v1461
        %1480 = vmatpush1.bf16.msra.mxu0 %v1460
        %1481 = vmatprep.subr.bf16.mxu0 %v1474
        %1482 = vmatpush1.bf16.msra.mxu0 %v1471
        %1483 = vmatprep.subr.bf16.mxu0 0
        %1484 = vmatpush1.bf16.msra.mxu0 0
        %1485 = vmatprep.subr.bf16.mxu0 0
        %1486 = vmatpush1.bf16.msra.mxu0 0
        %1487 = vmatprep.subr.bf16.mxu0 0
        %1488 = vmatpush1.bf16.msra.mxu0 0
        %1489 = vmatprep.subr.bf16.mxu0 0
        %1490 = vmatpush1.bf16.msra.mxu0 0
        %1491 = vmatprep.subr.bf16.mxu0 0
        %1492 = vmatpush1.bf16.msra.mxu0 0
        %1493 = vmatprep.subr.bf16.mxu0 0
        %1494 = vmatpush1.bf16.msra.mxu0 0
        %1495 = vmatprep.subr.bf16.mxu0 0
        %1496 = vmatpush1.bf16.msra.mxu0 0
        %1497 = vmatprep.subr.bf16.mxu0 0
        %1498 = vmatpush1.bf16.msra.mxu0 0
        %1499 = vmatprep.subr.bf16.mxu0 0
        %1500 = vmatpush1.bf16.msra.mxu0 0
        %1501 = vmatprep.subr.bf16.mxu0 0
        %1502 = vmatpush1.bf16.msra.mxu0 0
        %1503 = vmatprep.subr.bf16.mxu0 0
        %1504 = vmatpush1.bf16.msra.mxu0 0
        %1505 = vmatprep.subr.bf16.mxu0 0
        %1506 = vmatpush1.bf16.msra.mxu0 0
        %1507 = vmatprep.subr.bf16.mxu0 0
        %1508 = vmatpush1.bf16.msra.mxu0 0
        %1509 = vmatprep.subr.bf16.mxu0 0
        %1510 = vmatpush1.bf16.msra.mxu0 0
        %1511 = vmatprep.mubr.bf16.mxu0 0
        %1512 = vmatmul.mubr.bf16.gmra.mrb[0].mxu0 %v1468
        %v1513 = vpop.f32.mrb[0].mxu0
        %v1514 = vadd.f32 0.0, %v1513
        %v1515 = vpop.f32.mrb[0].mxu0
        %v1516 = vadd.f32 0.0, %v1515
        %v1517 = vpop.f32.mrb[0].mxu0
        %v1518 = vpop.f32.mrb[0].mxu0
        %1519 = vdwg.mxu0
        %1520 = vmatprep.subr.bf16.mxu0 0
        %1521 = vmatpush1.bf16.msra.mxu0 %v1453
        %1522 = vmatprep.subr.bf16.mxu0 0
        %1523 = vmatpush1.bf16.msra.mxu0 %v1477
        %1524 = vmatprep.subr.bf16.mxu0 0
        %1525 = vmatpush1.bf16.msra.mxu0 0
        %1526 = vmatprep.subr.bf16.mxu0 0
        %1527 = vmatpush1.bf16.msra.mxu0 0
        %1528 = vmatprep.subr.bf16.mxu0 0
        %1529 = vmatpush1.bf16.msra.mxu0 0
        %1530 = vmatprep.subr.bf16.mxu0 0
        %1531 = vmatpush1.bf16.msra.mxu0 0
        %1532 = vmatprep.subr.bf16.mxu0 0
        %1533 = vmatpush1.bf16.msra.mxu0 0
        %1534 = vmatprep.subr.bf16.mxu0 0
        %1535 = vmatpush1.bf16.msra.mxu0 0
        %1536 = vmatprep.subr.bf16.mxu0 0
        %1537 = vmatpush1.bf16.msra.mxu0 0
        %1538 = vmatprep.subr.bf16.mxu0 0
        %1539 = vmatpush1.bf16.msra.mxu0 0
        %1540 = vmatprep.subr.bf16.mxu0 0
        %1541 = vmatpush1.bf16.msra.mxu0 0
        %1542 = vmatprep.subr.bf16.mxu0 0
        %1543 = vmatpush1.bf16.msra.mxu0 0
        %1544 = vmatprep.subr.bf16.mxu0 0
        %1545 = vmatpush1.bf16.msra.mxu0 0
        %1546 = vmatprep.subr.bf16.mxu0 0
        %1547 = vmatpush1.bf16.msra.mxu0 0
        %1548 = vmatprep.subr.bf16.mxu0 0
        %1549 = vmatpush1.bf16.msra.mxu0 0
        %1550 = vmatprep.subr.bf16.mxu0 0
        %1551 = vmatpush1.bf16.msra.mxu0 0
        %1552 = vmatprep.mubr.bf16.mxu0 0
        %1553 = vmatmul.mubr.bf16.gmra.mrb[0].mxu0 %v1468
        %v1554 = vpop.f32.mrb[0].mxu0
        %v1555 = vadd.f32 0.0, %v1554
        %v1556 = vpop.f32.mrb[0].mxu0
        %v1557 = vpop.f32.mrb[0].mxu0
        %v1558 = vpop.f32.mrb[0].mxu0
        %1559 = vdwg.mxu0
        %v1560 = vadd.f32 %v1413, %v1514
        %v1561 = vadd.f32 %v1414, %v1516
        %v1562 = vadd.f32 %v1415, %v1555
        %v1563 = vsub.f32 %v335, %v1560
        %v1564 = vsub.f32 %v336, %v1561
        %v1565 = vsub.f32 %v337, %v1562
        %v1566 = vrot.slane %v1563, 4
        %v1567 = vmax.f32 %v1563, %v1566
        %v1568 = vrot.slane %v1567, 2
        %v1569 = vmax.f32 %v1567, %v1568
        %v1570 = vrot.slane %v1569, 1
        %v1571 = vmax.f32 %v1569, %v1570
        %v1572 = vrot.slane %v1564, 4
        %v1573 = vmax.f32 %v1564, %v1572
        %v1574 = vrot.slane %v1573, 2
        %v1575 = vmax.f32 %v1573, %v1574
        %v1576 = vrot.slane %v1575, 1
        %v1577 = vmax.f32 %v1575, %v1576
        %v1578 = vsel %vm422, %v1565, -inf
        %v1579 = vrot.slane %v1578, 4
        %v1580 = vmax.f32 %v1578, %v1579
        %v1581 = vrot.slane %v1580, 2
        %v1582 = vmax.f32 %v1580, %v1581
        %v1583 = vrot.slane %v1582, 1
        %v1584 = vmax.f32 %v1582, %v1583
        %v1585 = vsub.f32 %v1563, %v1571
        %v1586 = vsub.f32 %v1564, %v1577
        %v1587 = vsub.f32 %v1565, %v1584
        %v1588 = vmul.f32 %v1585, 1.442695
        %v1589 = vpow.pop %v1588
        %v1590 = vmul.f32 %v1586, 1.442695
        %v1591 = vpow.pop %v1590
        %v1592 = vmul.f32 %v1587, 1.442695
        %v1593 = vpow.pop %v1592
        %v1594 = vrot.slane %v1589, 4
        %v1595 = vadd.f32 %v1589, %v1594
        %v1596 = vrot.slane %v1595, 2
        %v1597 = vadd.f32 %v1595, %v1596
        %v1598 = vrot.slane %v1597, 1
        %v1599 = vadd.f32 %v1597, %v1598
        %v1600 = vrot.slane %v1591, 4
        %v1601 = vadd.f32 %v1591, %v1600
        %v1602 = vrot.slane %v1601, 2
        %v1603 = vadd.f32 %v1601, %v1602
        %v1604 = vrot.slane %v1603, 1
        %v1605 = vadd.f32 %v1603, %v1604
        %v1606 = vsel %vm422, %v1593, 0.0
        %v1607 = vrot.slane %v1606, 4
        %v1608 = vadd.f32 %v1606, %v1607
        %v1609 = vrot.slane %v1608, 2
        %v1610 = vadd.f32 %v1608, %v1609
        %v1611 = vrot.slane %v1610, 1
        %v1612 = vadd.f32 %v1610, %v1611
        %v1613 = vrcp.pop %v1599
        %v1614 = vmul.f32 %v1589, %v1613
        %v1615 = vrcp.pop %v1605
        %v1616 = vmul.f32 %v1591, %v1615
        %v1617 = vrcp.pop %v1612
        %v1618 = vmul.f32 %v1593, %v1617
        %v1619 = vmul.f32 %v1614, %v407
        %v1620 = vmul.f32 %v1616, %v411
        %v1621 = vmul.f32 %v1618, %v415
        %1622 = vst [vmem:[#allocation2 + $0x8] sm:$0xff] %v1619
        %1623 = vst [vmem:[#allocation2 + $0x10] sm:$0xff] %v1620
        %1624 = vst.msk [vmem:[#allocation2 + $0x18] sm:$0xff] %vm422, %v1621
        %v1625 = vld [vmem:[#allocation2] sm:$0xff]
        %v1626 = vld [vmem:[#allocation2 + $0x8] sm:$0xff]
        %v1627 = vld [vmem:[#allocation2 + $0x10] sm:$0xff]
        %v1628 = vld [vmem:[#allocation2 + $0x18] sm:$0xff]
        %v1629 = vmul.f32 %v1625, %v443
        %v1630 = vmul.f32 %v1626, %v449
        %v1631 = vmul.f32 %v1627, %v450
        %v1632 = vmul.f32 %v1628, %v447
        %v1633 = vmul.f32 %v1625, %v463
        %v1634 = vmul.f32 %v1626, %v469
        %v1635 = vmul.f32 %v1627, %v470
        %v1636 = vmul.f32 %v1628, %v467
        %1641 = vrot.lane.b32.xlu0 %v1625, 127
        %v1642 = vpop.permute.xlu0 %1641
        %1643 = vrot.lane.b32.xlu0 %v1626, 127
        %v1644 = vpop.permute.xlu0 %1643
        %1645 = vrot.lane.b32.xlu0 %v1627, 127
        %v1646 = vpop.permute.xlu0 %1645
        %1647 = vrot.lane.b32.xlu0 %v1628, 127
        %v1648 = vpop.permute.xlu0 %1647
        %v1649 = vsel %vm491, %v1642, %v1644
        %v1650 = vsel %vm491, %v1644, %v1646
        %v1651 = vsel %vm491, %v1646, %v1648
        %1660 = vrot.lane.b32.xlu0 %v1633, 126
        %v1661 = vpop.permute.xlu0 %1660
        %1662 = vrot.lane.b32.xlu0 %v1634, 126
        %v1663 = vpop.permute.xlu0 %1662
        %1664 = vrot.lane.b32.xlu0 %v1635, 126
        %v1665 = vpop.permute.xlu0 %1664
        %1666 = vrot.lane.b32.xlu0 %v1636, 126
        %v1667 = vpop.permute.xlu0 %1666
        %v1668 = vsel %vm511, %v1661, %v1663
        %v1669 = vsel %vm511, %v1663, %v1665
        %v1670 = vsel %vm511, %v1665, %v1667
        %v1675 = vpack.c.bf16 %v1649, %v1629
        %v1676 = vpack.c.bf16 %v1650, %v1630
        %v1677 = vpack.c.bf16 %v1651, %v1631
        %v1678 = vpack.c.bf16 %v1648, %v1632
        %v1679 = vpack.c.bf16 %v1668, %v1668
        %v1680 = vpack.c.bf16 %v1669, %v1669
        %v1681 = vpack.c.bf16 %v1670, %v1670
        %v1682 = vpack.c.bf16 %v1667, %v1667
        %1691 = vrot.lane.b32.xlu0 %v1675, 17
        %v1692 = vpop.permute.xlu0 %1691
        %1693 = vrot.lane.b32.xlu0 %v1676, 17
        %v1694 = vpop.permute.xlu0 %1693
        %1695 = vrot.lane.b32.xlu0 %v1677, 17
        %v1696 = vpop.permute.xlu0 %1695
        %1697 = vrot.lane.b32.xlu0 %v1678, 17
        %v1698 = vpop.permute.xlu0 %1697
        %1699 = vrot.lane.b32.xlu0 %v1679, 17
        %v1700 = vpop.permute.xlu0 %1699
        %1701 = vrot.lane.b32.xlu0 %v1680, 17
        %v1702 = vpop.permute.xlu0 %1701
        %1703 = vrot.lane.b32.xlu0 %v1681, 17
        %v1704 = vpop.permute.xlu0 %1703
        %1705 = vrot.lane.b32.xlu0 %v1682, 17
        %v1706 = vpop.permute.xlu0 %1705
        %v1707 = vsel %vm735, %v1692, %v1694
        %v1708 = vsel %vm735, %v1694, %v1696
        %v1709 = vsel %vm735, %v1696, %v1698
        %v1710 = vsel %vm735, %v1700, %v1702
        %v1711 = vsel %vm735, %v1702, %v1704
        %v1712 = vsel %vm735, %v1704, %v1706
        %v1717 = vsel %vm620, %v1710, 0
        %v1720 = vsel %vm620, %v1711, 0
        %v1723 = vsel %vm620, %v1712, 0
        %1725 = vmatprep.subr.bf16.mxu0 %v1708
        %1726 = vmatpush1.bf16.msra.mxu0 %v1707
        %1727 = vmatprep.subr.bf16.mxu0 %v1720
        %1728 = vmatpush1.bf16.msra.mxu0 %v1717
        %1729 = vmatprep.subr.bf16.mxu0 0
        %1730 = vmatpush1.bf16.msra.mxu0 0
        %1731 = vmatprep.subr.bf16.mxu0 0
        %1732 = vmatpush1.bf16.msra.mxu0 0
        %1733 = vmatprep.subr.bf16.mxu0 0
        %1734 = vmatpush1.bf16.msra.mxu0 0
        %1735 = vmatprep.subr.bf16.mxu0 0
        %1736 = vmatpush1.bf16.msra.mxu0 0
        %1737 = vmatprep.subr.bf16.mxu0 0
        %1738 = vmatpush1.bf16.msra.mxu0 0
        %1739 = vmatprep.subr.bf16.mxu0 0
        %1740 = vmatpush1.bf16.msra.mxu0 0
        %1741 = vmatprep.subr.bf16.mxu0 0
        %1742 = vmatpush1.bf16.msra.mxu0 0
        %1743 = vmatprep.subr.bf16.mxu0 0
        %1744 = vmatpush1.bf16.msra.mxu0 0
        %1745 = vmatprep.subr.bf16.mxu0 0
        %1746 = vmatpush1.bf16.msra.mxu0 0
        %1747 = vmatprep.subr.bf16.mxu0 0
        %1748 = vmatpush1.bf16.msra.mxu0 0
        %1749 = vmatprep.subr.bf16.mxu0 0
        %1750 = vmatpush1.bf16.msra.mxu0 0
        %1751 = vmatprep.subr.bf16.mxu0 0
        %1752 = vmatpush1.bf16.msra.mxu0 0
        %1753 = vmatprep.subr.bf16.mxu0 0
        %1754 = vmatpush1.bf16.msra.mxu0 0
        %1755 = vmatprep.subr.bf16.mxu0 0
        %1756 = vmatpush1.bf16.msra.mxu0 0
        %1757 = vmatprep.mubr.bf16.mxu0 0
        %1758 = vmatmul.mubr.bf16.gmra.mrb[0].mxu0 %v1161
        %v1759 = vpop.f32.mrb[0].mxu0
        %v1760 = vadd.f32 0.0, %v1759
        %v1761 = vpop.f32.mrb[0].mxu0
        %v1762 = vadd.f32 0.0, %v1761
        %v1763 = vpop.f32.mrb[0].mxu0
        %v1764 = vpop.f32.mrb[0].mxu0
        %1765 = vdwg.mxu0
        %1766 = vmatprep.subr.bf16.mxu0 0
        %1767 = vmatpush1.bf16.msra.mxu0 %v1709
        %1768 = vmatprep.subr.bf16.mxu0 0
        %1769 = vmatpush1.bf16.msra.mxu0 %v1723
        %1770 = vmatprep.subr.bf16.mxu0 0
        %1771 = vmatpush1.bf16.msra.mxu0 0
        %1772 = vmatprep.subr.bf16.mxu0 0
        %1773 = vmatpush1.bf16.msra.mxu0 0
        %1774 = vmatprep.subr.bf16.mxu0 0
        %1775 = vmatpush1.bf16.msra.mxu0 0
        %1776 = vmatprep.subr.bf16.mxu0 0
        %1777 = vmatpush1.bf16.msra.mxu0 0
        %1778 = vmatprep.subr.bf16.mxu0 0
        %1779 = vmatpush1.bf16.msra.mxu0 0
        %1780 = vmatprep.subr.bf16.mxu0 0
        %1781 = vmatpush1.bf16.msra.mxu0 0
        %1782 = vmatprep.subr.bf16.mxu0 0
        %1783 = vmatpush1.bf16.msra.mxu0 0
        %1784 = vmatprep.subr.bf16.mxu0 0
        %1785 = vmatpush1.bf16.msra.mxu0 0
        %1786 = vmatprep.subr.bf16.mxu0 0
        %1787 = vmatpush1.bf16.msra.mxu0 0
        %1788 = vmatprep.subr.bf16.mxu0 0
        %1789 = vmatpush1.bf16.msra.mxu0 0
        %1790 = vmatprep.subr.bf16.mxu0 0
        %1791 = vmatpush1.bf16.msra.mxu0 0
        %1792 = vmatprep.subr.bf16.mxu0 0
        %1793 = vmatpush1.bf16.msra.mxu0 0
        %1794 = vmatprep.subr.bf16.mxu0 0
        %1795 = vmatpush1.bf16.msra.mxu0 0
        %1796 = vmatprep.subr.bf16.mxu0 0
        %1797 = vmatpush1.bf16.msra.mxu0 0
        %1798 = vmatprep.mubr.bf16.mxu0 0
        %1799 = vmatmul.mubr.bf16.gmra.mrb[0].mxu0 %v1161
        %v1800 = vpop.f32.mrb[0].mxu0
        %v1801 = vadd.f32 0.0, %v1800
        %v1802 = vpop.f32.mrb[0].mxu0
        %v1803 = vpop.f32.mrb[0].mxu0
        %v1804 = vpop.f32.mrb[0].mxu0
        %1805 = vdwg.mxu0
        %v1806 = vadd.f32 %v1007, %v1760
        %v1807 = vadd.f32 %v1008, %v1762
        %v1808 = vadd.f32 %v1009, %v1801
        %v1809 = vmul.f32 %v1625, %v528
        %v1810 = vmul.f32 %v1626, %v533
        %v1811 = vmul.f32 %v1627, %v534
        %v1812 = vmul.f32 %v1628, %v532
        %v1813 = vmul.f32 %v1626, %v544
        %v1814 = vmul.f32 %v1627, %v550
        %v1815 = vmul.f32 %v1628, %v551
        %1820 = vrot.lane.b32.xlu0 %v1813, 126
        %v1821 = vpop.permute.xlu0 %1820
        %1822 = vrot.lane.b32.xlu0 %v1814, 126
        %v1823 = vpop.permute.xlu0 %1822
        %1824 = vrot.lane.b32.xlu0 %v1815, 126
        %v1825 = vpop.permute.xlu0 %1824
        %v1826 = vsel %vm511, %v1821, %v1823
        %v1827 = vsel %vm511, %v1823, %v1825
        %v1832 = vpack.c.bf16 %v1644, %v1809
        %v1833 = vpack.c.bf16 %v1650, %v1810
        %v1834 = vpack.c.bf16 %v1651, %v1811
        %v1835 = vpack.c.bf16 %v1648, %v1812
        %v1836 = vpack.c.bf16 %v1821, %v1821
        %v1837 = vpack.c.bf16 %v1826, %v1826
        %v1838 = vpack.c.bf16 %v1827, %v1827
        %v1839 = vpack.c.bf16 %v1825, %v1825
        %1848 = vrot.lane.b32.xlu0 %v1832, 1
        %v1849 = vpop.permute.xlu0 %1848
        %1850 = vrot.lane.b32.xlu0 %v1833, 1
        %v1851 = vpop.permute.xlu0 %1850
        %1852 = vrot.lane.b32.xlu0 %v1834, 1
        %v1853 = vpop.permute.xlu0 %1852
        %1854 = vrot.lane.b32.xlu0 %v1835, 1
        %v1855 = vpop.permute.xlu0 %1854
        %1856 = vrot.lane.b32.xlu0 %v1836, 1
        %v1857 = vpop.permute.xlu0 %1856
        %1858 = vrot.lane.b32.xlu0 %v1837, 1
        %v1859 = vpop.permute.xlu0 %1858
        %1860 = vrot.lane.b32.xlu0 %v1838, 1
        %v1861 = vpop.permute.xlu0 %1860
        %1862 = vrot.lane.b32.xlu0 %v1839, 1
        %v1863 = vpop.permute.xlu0 %1862
        %v1864 = vsel %vm606, %v1849, %v1851
        %v1865 = vsel %vm606, %v1851, %v1853
        %v1866 = vsel %vm606, %v1853, %v1855
        %v1867 = vsel %vm606, %v1857, %v1859
        %v1868 = vsel %vm606, %v1859, %v1861
        %v1869 = vsel %vm606, %v1861, %v1863
        %v1874 = vsel %vm620, %v1867, 0
        %v1877 = vsel %vm620, %v1868, 0
        %v1880 = vsel %vm620, %v1869, 0
        %1882 = vmatprep.subr.bf16.mxu0 %v1865
        %1883 = vmatpush1.bf16.msra.mxu0 %v1864
        %1884 = vmatprep.subr.bf16.mxu0 %v1877
        %1885 = vmatpush1.bf16.msra.mxu0 %v1874
        %1886 = vmatprep.subr.bf16.mxu0 0
        %1887 = vmatpush1.bf16.msra.mxu0 0
        %1888 = vmatprep.subr.bf16.mxu0 0
        %1889 = vmatpush1.bf16.msra.mxu0 0
        %1890 = vmatprep.subr.bf16.mxu0 0
        %1891 = vmatpush1.bf16.msra.mxu0 0
        %1892 = vmatprep.subr.bf16.mxu0 0
        %1893 = vmatpush1.bf16.msra.mxu0 0
        %1894 = vmatprep.subr.bf16.mxu0 0
        %1895 = vmatpush1.bf16.msra.mxu0 0
        %1896 = vmatprep.subr.bf16.mxu0 0
        %1897 = vmatpush1.bf16.msra.mxu0 0
        %1898 = vmatprep.subr.bf16.mxu0 0
        %1899 = vmatpush1.bf16.msra.mxu0 0
        %1900 = vmatprep.subr.bf16.mxu0 0
        %1901 = vmatpush1.bf16.msra.mxu0 0
        %1902 = vmatprep.subr.bf16.mxu0 0
        %1903 = vmatpush1.bf16.msra.mxu0 0
        %1904 = vmatprep.subr.bf16.mxu0 0
        %1905 = vmatpush1.bf16.msra.mxu0 0
        %1906 = vmatprep.subr.bf16.mxu0 0
        %1907 = vmatpush1.bf16.msra.mxu0 0
        %1908 = vmatprep.subr.bf16.mxu0 0
        %1909 = vmatpush1.bf16.msra.mxu0 0
        %1910 = vmatprep.subr.bf16.mxu0 0
        %1911 = vmatpush1.bf16.msra.mxu0 0
        %1912 = vmatprep.subr.bf16.mxu0 0
        %1913 = vmatpush1.bf16.msra.mxu0 0
        %1914 = vmatprep.mubr.bf16.mxu0 0
        %1915 = vmatmul.mubr.bf16.gmra.mrb[0].mxu0 %v1321
        %v1916 = vpop.f32.mrb[0].mxu0
        %v1917 = vadd.f32 0.0, %v1916
        %v1918 = vpop.f32.mrb[0].mxu0
        %v1919 = vadd.f32 0.0, %v1918
        %v1920 = vpop.f32.mrb[0].mxu0
        %v1921 = vpop.f32.mrb[0].mxu0
        %1922 = vdwg.mxu0
        %1923 = vmatprep.subr.bf16.mxu0 0
        %1924 = vmatpush1.bf16.msra.mxu0 %v1866
        %1925 = vmatprep.subr.bf16.mxu0 0
        %1926 = vmatpush1.bf16.msra.mxu0 %v1880
        %1927 = vmatprep.subr.bf16.mxu0 0
        %1928 = vmatpush1.bf16.msra.mxu0 0
        %1929 = vmatprep.subr.bf16.mxu0 0
        %1930 = vmatpush1.bf16.msra.mxu0 0
        %1931 = vmatprep.subr.bf16.mxu0 0
        %1932 = vmatpush1.bf16.msra.mxu0 0
        %1933 = vmatprep.subr.bf16.mxu0 0
        %1934 = vmatpush1.bf16.msra.mxu0 0
        %1935 = vmatprep.subr.bf16.mxu0 0
        %1936 = vmatpush1.bf16.msra.mxu0 0
        %1937 = vmatprep.subr.bf16.mxu0 0
        %1938 = vmatpush1.bf16.msra.mxu0 0
        %1939 = vmatprep.subr.bf16.mxu0 0
        %1940 = vmatpush1.bf16.msra.mxu0 0
        %1941 = vmatprep.subr.bf16.mxu0 0
        %1942 = vmatpush1.bf16.msra.mxu0 0
        %1943 = vmatprep.subr.bf16.mxu0 0
        %1944 = vmatpush1.bf16.msra.mxu0 0
        %1945 = vmatprep.subr.bf16.mxu0 0
        %1946 = vmatpush1.bf16.msra.mxu0 0
        %1947 = vmatprep.subr.bf16.mxu0 0
        %1948 = vmatpush1.bf16.msra.mxu0 0
        %1949 = vmatprep.subr.bf16.mxu0 0
        %1950 = vmatpush1.bf16.msra.mxu0 0
        %1951 = vmatprep.subr.bf16.mxu0 0
        %1952 = vmatpush1.bf16.msra.mxu0 0
        %1953 = vmatprep.subr.bf16.mxu0 0
        %1954 = vmatpush1.bf16.msra.mxu0 0
        %1955 = vmatprep.mubr.bf16.mxu0 0
        %1956 = vmatmul.mubr.bf16.gmra.mrb[0].mxu0 %v1321
        %v1957 = vpop.f32.mrb[0].mxu0
        %v1958 = vadd.f32 0.0, %v1957
        %v1959 = vpop.f32.mrb[0].mxu0
        %v1960 = vpop.f32.mrb[0].mxu0
        %v1961 = vpop.f32.mrb[0].mxu0
        %1962 = vdwg.mxu0
        %v1963 = vadd.f32 %v1806, %v1917
        %v1964 = vadd.f32 %v1807, %v1919
        %v1965 = vadd.f32 %v1808, %v1958
        %v1966 = vmul.f32 %v1626, %v839
        %v1967 = vmul.f32 %v1627, %v845
        %v1968 = vmul.f32 %v1628, %v846
        %v1969 = vmul.f32 %v1626, %v854
        %v1970 = vmul.f32 %v1627, %v860
        %v1971 = vmul.f32 %v1628, %v861
        %1975 = vrot.lane.b32.xlu0 %v1969, 126
        %v1976 = vpop.permute.xlu0 %1975
        %1977 = vrot.lane.b32.xlu0 %v1970, 126
        %v1978 = vpop.permute.xlu0 %1977
        %1979 = vrot.lane.b32.xlu0 %v1971, 126
        %v1980 = vpop.permute.xlu0 %1979
        %v1981 = vsel %vm511, %v1976, %v1978
        %v1982 = vsel %vm511, %v1978, %v1980
        %v1986 = vpack.c.bf16 %v1650, %v1966
        %v1987 = vpack.c.bf16 %v1651, %v1967
        %v1988 = vpack.c.bf16 %v1648, %v1968
        %v1989 = vpack.c.bf16 %v1981, %v1981
        %v1990 = vpack.c.bf16 %v1982, %v1982
        %v1991 = vpack.c.bf16 %v1980, %v1980
        %1998 = vrot.lane.b32.xlu0 %v1986, 113
        %v1999 = vpop.permute.xlu0 %1998
        %2000 = vrot.lane.b32.xlu0 %v1987, 113
        %v2001 = vpop.permute.xlu0 %2000
        %2002 = vrot.lane.b32.xlu0 %v1988, 113
        %v2003 = vpop.permute.xlu0 %2002
        %2004 = vrot.lane.b32.xlu0 %v1989, 113
        %v2005 = vpop.permute.xlu0 %2004
        %2006 = vrot.lane.b32.xlu0 %v1990, 113
        %v2007 = vpop.permute.xlu0 %2006
        %2008 = vrot.lane.b32.xlu0 %v1991, 113
        %v2009 = vpop.permute.xlu0 %2008
        %v2010 = vsel %vm906, %v1999, %v2001
        %v2011 = vsel %vm906, %v2001, %v2003
        %v2012 = vsel %vm906, %v2005, %v2007
        %v2013 = vsel %vm906, %v2007, %v2009
        %v2018 = vsel %vm620, %v2012, 0
        %v2021 = vsel %vm620, %v2013, 0
        %v2024 = vsel %vm620, %v2009, 0
        %2026 = vmatprep.subr.bf16.mxu0 %v2011
        %2027 = vmatpush1.bf16.msra.mxu0 %v2010
        %2028 = vmatprep.subr.bf16.mxu0 %v2021
        %2029 = vmatpush1.bf16.msra.mxu0 %v2018
        %2030 = vmatprep.subr.bf16.mxu0 0
        %2031 = vmatpush1.bf16.msra.mxu0 0
        %2032 = vmatprep.subr.bf16.mxu0 0
        %2033 = vmatpush1.bf16.msra.mxu0 0
        %2034 = vmatprep.subr.bf16.mxu0 0
        %2035 = vmatpush1.bf16.msra.mxu0 0
        %2036 = vmatprep.subr.bf16.mxu0 0
        %2037 = vmatpush1.bf16.msra.mxu0 0
        %2038 = vmatprep.subr.bf16.mxu0 0
        %2039 = vmatpush1.bf16.msra.mxu0 0
        %2040 = vmatprep.subr.bf16.mxu0 0
        %2041 = vmatpush1.bf16.msra.mxu0 0
        %2042 = vmatprep.subr.bf16.mxu0 0
        %2043 = vmatpush1.bf16.msra.mxu0 0
        %2044 = vmatprep.subr.bf16.mxu0 0
        %2045 = vmatpush1.bf16.msra.mxu0 0
        %2046 = vmatprep.subr.bf16.mxu0 0
        %2047 = vmatpush1.bf16.msra.mxu0 0
        %2048 = vmatprep.subr.bf16.mxu0 0
        %2049 = vmatpush1.bf16.msra.mxu0 0
        %2050 = vmatprep.subr.bf16.mxu0 0
        %2051 = vmatpush1.bf16.msra.mxu0 0
        %2052 = vmatprep.subr.bf16.mxu0 0
        %2053 = vmatpush1.bf16.msra.mxu0 0
        %2054 = vmatprep.subr.bf16.mxu0 0
        %2055 = vmatpush1.bf16.msra.mxu0 0
        %2056 = vmatprep.subr.bf16.mxu0 0
        %2057 = vmatpush1.bf16.msra.mxu0 0
        %2058 = vmatprep.mubr.bf16.mxu0 0
        %2059 = vmatmul.mubr.bf16.gmra.mrb[0].mxu0 %v1468
        %v2060 = vpop.f32.mrb[0].mxu0
        %v2061 = vadd.f32 0.0, %v2060
        %v2062 = vpop.f32.mrb[0].mxu0
        %v2063 = vadd.f32 0.0, %v2062
        %v2064 = vpop.f32.mrb[0].mxu0
        %v2065 = vpop.f32.mrb[0].mxu0
        %2066 = vdwg.mxu0
        %2067 = vmatprep.subr.bf16.mxu0 0
        %2068 = vmatpush1.bf16.msra.mxu0 %v2003
        %2069 = vmatprep.subr.bf16.mxu0 0
        %2070 = vmatpush1.bf16.msra.mxu0 %v2024
        %2071 = vmatprep.subr.bf16.mxu0 0
        %2072 = vmatpush1.bf16.msra.mxu0 0
        %2073 = vmatprep.subr.bf16.mxu0 0
        %2074 = vmatpush1.bf16.msra.mxu0 0
        %2075 = vmatprep.subr.bf16.mxu0 0
        %2076 = vmatpush1.bf16.msra.mxu0 0
        %2077 = vmatprep.subr.bf16.mxu0 0
        %2078 = vmatpush1.bf16.msra.mxu0 0
        %2079 = vmatprep.subr.bf16.mxu0 0
        %2080 = vmatpush1.bf16.msra.mxu0 0
        %2081 = vmatprep.subr.bf16.mxu0 0
        %2082 = vmatpush1.bf16.msra.mxu0 0
        %2083 = vmatprep.subr.bf16.mxu0 0
        %2084 = vmatpush1.bf16.msra.mxu0 0
        %2085 = vmatprep.subr.bf16.mxu0 0
        %2086 = vmatpush1.bf16.msra.mxu0 0
        %2087 = vmatprep.subr.bf16.mxu0 0
        %2088 = vmatpush1.bf16.msra.mxu0 0
        %2089 = vmatprep.subr.bf16.mxu0 0
        %2090 = vmatpush1.bf16.msra.mxu0 0
        %2091 = vmatprep.subr.bf16.mxu0 0
        %2092 = vmatpush1.bf16.msra.mxu0 0
        %2093 = vmatprep.subr.bf16.mxu0 0
        %2094 = vmatpush1.bf16.msra.mxu0 0
        %2095 = vmatprep.subr.bf16.mxu0 0
        %2096 = vmatpush1.bf16.msra.mxu0 0
        %2097 = vmatprep.subr.bf16.mxu0 0
        %2098 = vmatpush1.bf16.msra.mxu0 0
        %2099 = vmatprep.mubr.bf16.mxu0 0
        %2100 = vmatmul.mubr.bf16.gmra.mrb[0].mxu0 %v1468
        %v2101 = vpop.f32.mrb[0].mxu0
        %v2102 = vadd.f32 0.0, %v2101
        %v2103 = vpop.f32.mrb[0].mxu0
        %v2104 = vpop.f32.mrb[0].mxu0
        %v2105 = vpop.f32.mrb[0].mxu0
        %2106 = vdwg.mxu0
        %v2107 = vadd.f32 %v1963, %v2061
        %v2108 = vadd.f32 %v1964, %v2063
        %v2109 = vadd.f32 %v1965, %v2102
        %v2110 = vsub.f32 %v335, %v2107
        %v2111 = vsub.f32 %v336, %v2108
        %v2112 = vsub.f32 %v337, %v2109
        %v2113 = vrot.slane %v2110, 4
        %v2114 = vmax.f32 %v2110, %v2113
        %v2115 = vrot.slane %v2114, 2
        %v2116 = vmax.f32 %v2114, %v2115
        %v2117 = vrot.slane %v2116, 1
        %v2118 = vmax.f32 %v2116, %v2117
        %v2119 = vrot.slane %v2111, 4
        %v2120 = vmax.f32 %v2111, %v2119
        %v2121 = vrot.slane %v2120, 2
        %v2122 = vmax.f32 %v2120, %v2121
        %v2123 = vrot.slane %v2122, 1
        %v2124 = vmax.f32 %v2122, %v2123
        %v2125 = vsel %vm422, %v2112, -inf
        %v2126 = vrot.slane %v2125, 4
        %v2127 = vmax.f32 %v2125, %v2126
        %v2128 = vrot.slane %v2127, 2
        %v2129 = vmax.f32 %v2127, %v2128
        %v2130 = vrot.slane %v2129, 1
        %v2131 = vmax.f32 %v2129, %v2130
        %v2132 = vsub.f32 %v2110, %v2118
        %v2133 = vsub.f32 %v2111, %v2124
        %v2134 = vsub.f32 %v2112, %v2131
        %v2135 = vmul.f32 %v2132, 1.442695
        %v2136 = vpow.pop %v2135
        %v2137 = vmul.f32 %v2133, 1.442695
        %v2138 = vpow.pop %v2137
        %v2139 = vmul.f32 %v2134, 1.442695
        %v2140 = vpow.pop %v2139
        %v2141 = vrot.slane %v2136, 4
        %v2142 = vadd.f32 %v2136, %v2141
        %v2143 = vrot.slane %v2142, 2
        %v2144 = vadd.f32 %v2142, %v2143
        %v2145 = vrot.slane %v2144, 1
        %v2146 = vadd.f32 %v2144, %v2145
        %v2147 = vrot.slane %v2138, 4
        %v2148 = vadd.f32 %v2138, %v2147
        %v2149 = vrot.slane %v2148, 2
        %v2150 = vadd.f32 %v2148, %v2149
        %v2151 = vrot.slane %v2150, 1
        %v2152 = vadd.f32 %v2150, %v2151
        %v2153 = vsel %vm422, %v2140, 0.0
        %v2154 = vrot.slane %v2153, 4
        %v2155 = vadd.f32 %v2153, %v2154
        %v2156 = vrot.slane %v2155, 2
        %v2157 = vadd.f32 %v2155, %v2156
        %v2158 = vrot.slane %v2157, 1
        %v2159 = vadd.f32 %v2157, %v2158
        %v2160 = vrcp.pop %v2146
        %v2161 = vmul.f32 %v2136, %v2160
        %v2162 = vrcp.pop %v2152
        %v2163 = vmul.f32 %v2138, %v2162
        %v2164 = vrcp.pop %v2159
        %v2165 = vmul.f32 %v2140, %v2164
        %2169 = vrot.lane.b32.xlu0 %v2161, 96
        %v2170 = vpop.permute.xlu0 %2169
        %2171 = vrot.lane.b32.xlu0 %v2163, 96
        %v2172 = vpop.permute.xlu0 %2171
        %2173 = vrot.lane.b32.xlu0 %v2165, 96
        %v2174 = vpop.permute.xlu0 %2173
        %vm2175 = vcmask 785408
        %v2176 = vsel %vm2175, %v2170, %v2172
        %v2177 = vsel %vm2175, %v2172, %v2174
        %2180 = vst [vmem:[%s333] sm:$0xff] %v2176
        %2181 = vst [vmem:[%s333 + $0x8] sm:$0xff] %v2177
        %s2182 = sand.u32 %s170, 1
        %s2183 = scalar_lea.sflag [#allocation6], %s2182
        %s2184 = sand.u32 %s170, 1
        %s2185 = smul.addr %s2184, 16
        %s2186 = scalar_lea.vmem [#allocation12], %s2185
        // Predicated region
        $region57: #{tpu_custom_call.1} parent=39 // pred_check
          %p2187 = pneg %p180
        $region58: #{tpu_custom_call.1} parent=39 // pred_check_branch
          %2189 = sbr.rel (%p2187) target = $region60
        $region59: #{tpu_custom_call.1} parent=39 // pred_region
          %s2191 = ssub.s32 256, 256
          %2192 = vsyncadd %s2183, %s2191
          %s2193 = smul.addr %s28, 2
          %s2194 = smul.addr %s29, 2
          %s2195 = sadd.s32 %s2193, %s2194
          %s2196 = smul.addr %s2195, 128
          %s2197 = scalar_lea.hbm %s5, %s2196
          %s2199 = sshll.u32 %s2186, 4
          %s2200 = int_to_ptr.vmem [resolvable:$true] %s2199
          %2202 = dma.vmem_to_hbm [thread:$0]  %s2200, 256, %s2197, %s2183
        $region60: #{tpu_custom_call.1} parent=39 // pred_fallthru
          _
      $region40: #{tpu_custom_call.1} parent=5 // pred_fallthru
        _
      %p2203 = scmp.le.s32.totalorder 2, %s19
      // Predicated region
      $region61: #{tpu_custom_call.1} parent=5 // pred_check
        %p2204 = pneg %p2203
      $region62: #{tpu_custom_call.1} parent=5 // pred_check_branch
        %2206 = sbr.rel (%p2204) target = $region64
      $region63: #{tpu_custom_call.1} parent=5 // pred_region
        %s2207 = ssub.s32 %s19, 2
        // Predicated region
        $region65: #{tpu_custom_call.1} parent=63 // pred_check
          %p2208 = pneg %p186
        $region66: #{tpu_custom_call.1} parent=63 // pred_check_branch
          %2210 = sbr.rel (%p2208) target = $region68
        $region67: #{tpu_custom_call.1} parent=63 // pred_region
          %s2211 = sand.u32 %s171, 1
          %s2212 = scalar_lea.sflag [#allocation6], %s2211
          %s2213 = sand.u32 %s171, 1
          %s2214 = smul.addr %s2213, 16
          %s2215 = scalar_lea.vmem [#allocation12], %s2214
          %2216 = dma.done %s2212, 256
        $region68: #{tpu_custom_call.1} parent=63 // pred_fallthru
          _
      $region64: #{tpu_custom_call.1} parent=5 // pred_fallthru
        _
    $region6: #{tpu_custom_call.1} parent=1 // loop_footer
      %s23 = sadd.s32 1, %s19
    $region7: #{tpu_custom_call.1} parent=1 // loop_footer_branch
      %18 = sbr.rel target = $region3
    $region8: #{tpu_custom_call.1} parent=1 // loop_exit
      _
    %2217 = vsyncpa [#allocation5], 1
    %s2218 = scalar_lea.sflag [#allocation5], 1
    %2219 = vsyncpa %s2218, 1
    %2220 = vsyncpa [#allocation8], 1
    %s2221 = scalar_lea.sflag [#allocation8], 1
    %2222 = vsyncpa %s2221, 1
    %2223 = vsyncpa [#allocation11], 1
    %2224 = vsyncpa [#allocation6], 1
    %s2225 = scalar_lea.sflag [#allocation6], 1
    %2226 = vsyncpa %s2225, 1

</llo_original>
